<compile_context>
chip_gen: v7x
topology: tpu7x:2x2x1
jax: 0.10.0
libtpu: 0.0.40
codegen_flags: <defaults>
</compile_context>

<pallas_src>
import math

import jax
import jax.numpy as jnp
from jax import lax
from jax.experimental import pallas as pl
from jax.experimental.pallas import tpu as pltpu


# ------------------------------ small helpers -------------------------------

def _round_up(x, m):
    return (x + m - 1) // m * m


def _pack_rows(segments, width):
    """Stack 2-D arrays row-wise into one f32 (R, width) slab.

    Each segment is zero-padded to `width` columns and to a multiple of 8 rows
    so every in-kernel slice starts on a sublane-tile boundary.
    Returns (slab, tuple_of_row_offsets).
    """
    parts, offsets, cur = [], [], 0
    for seg in segments:
        seg = jnp.asarray(seg, jnp.float32)
        r, c = seg.shape
        rp = _round_up(r, 8)
        buf = jnp.zeros((rp, width), jnp.float32).at[:r, :c].set(seg)
        parts.append(buf)
        offsets.append(cur)
        cur += rp
    return jnp.concatenate(parts, axis=0), tuple(offsets)


# ----------------------------- parameter setup ------------------------------

def _linear_params(key, fan_in, fan_out):
    """PyTorch-default-like deterministic init. W as (in, out), b as (out,)."""
    kw, kb = jax.random.split(key)
    bound = 1.0 / math.sqrt(fan_in)
    w = jax.random.uniform(kw, (fan_in, fan_out), jnp.float32, -bound, bound)
    b = jax.random.uniform(kb, (fan_out,), jnp.float32, -bound, bound)
    return w, b


def init_mlp_params(key, in_dim, out_dim, hidden_list, numb_multihead):
    h0, h1 = hidden_list[0], hidden_list[1]
    tail = hidden_list[2:]
    keys = jax.random.split(key, 7)

    def seq3(k, d_in):
        ks = jax.random.split(k, 3)
        return [_linear_params(ks[0], d_in, h0),
                _linear_params(ks[1], h0, h1),
                _linear_params(ks[2], h1, h1)]

    params = {
        "q1": seq3(keys[0], in_dim + 6),
        "q2": seq3(keys[1], in_dim),
        "k": seq3(keys[2], in_dim),
        "v": seq3(keys[3], in_dim),
        "l2": seq3(keys[4], h1 * numb_multihead),
        "coord": seq3(keys[5], 3),
    }
    lastv = h1
    kouts = jax.random.split(keys[6], len(tail) + 1)
    outs = []
    for i, hidden in enumerate(tail):
        outs.append(_linear_params(kouts[i], lastv, hidden))
        lastv = hidden
    outs.append(_linear_params(kouts[-1], lastv, out_dim))
    params["out"] = outs
    return params


# ------------------------------ weight packing -------------------------------

def _pack_stage_a(params, in_dim, H):
    """Block-diagonal packing of layers_q1/q2/k/v into one (R, 4H) slab.

    Layer 1 is split into two 8-row-aligned row blocks (feature_coord rows and
    feature rows) so the kernel consumes the two raw inputs directly (no
    combined padded input slab in HBM).  Layer-1/2 outputs are [q1|q2|k|v]
    blocks of width H; the packed layer-3 directly produces [q1-q2 | k | v | 0].
    """
    dq1 = in_dim + 6
    SW = 4 * H

    (wq1_1, bq1_1), (wq1_2, bq1_2), (wq1_3, bq1_3) = params["q1"]
    (wq2_1, bq2_1), (wq2_2, bq2_2), (wq2_3, bq2_3) = params["q2"]
    (wk_1, bk_1), (wk_2, bk_2), (wk_3, bk_3) = params["k"]
    (wv_1, bv_1), (wv_2, bv_2), (wv_3, bv_3) = params["v"]

    w1a = jnp.zeros((dq1, SW), jnp.float32).at[:, 0:H].set(wq1_1)
    w1b = jnp.zeros((in_dim, SW), jnp.float32)
    w1b = w1b.at[:, H:2 * H].set(wq2_1)
    w1b = w1b.at[:, 2 * H:3 * H].set(wk_1)
    w1b = w1b.at[:, 3 * H:4 * H].set(wv_1)
    b1 = jnp.concatenate([bq1_1, bq2_1, bk_1, bv_1]).reshape(1, SW)

    w2 = jnp.zeros((SW, SW), jnp.float32)
    for i, w in enumerate([wq1_2, wq2_2, wk_2, wv_2]):
        w2 = w2.at[i * H:(i + 1) * H, i * H:(i + 1) * H].set(w)
    b2 = jnp.concatenate([bq1_2, bq2_2, bk_2, bv_2]).reshape(1, SW)

    w3 = jnp.zeros((SW, SW), jnp.float32)
    w3 = w3.at[0:H, 0:H].set(wq1_3)
    w3 = w3.at[H:2 * H, 0:H].set(-wq2_3)      # folds the (q1 - q2) subtraction
    w3 = w3.at[2 * H:3 * H, H:2 * H].set(wk_3)
    w3 = w3.at[3 * H:4 * H, 2 * H:3 * H].set(wv_3)
    b3 = jnp.zeros((1, SW), jnp.float32)
    b3 = b3.at[0, 0:H].set(bq1_3 - bq2_3)
    b3 = b3.at[0, H:2 * H].set(bk_3)
    b3 = b3.at[0, 2 * H:3 * H].set(bv_3)

    return _pack_rows([w1a, w1b, b1, w2, b2, w3, b3], SW)


def _pack_stage_b(params, H, numb_multihead, n_tail):
    """layers2 + layers_coord fused block-diagonally (width 2H), plus the
    hidden layers_out layers with the `y + c` add folded into the first one."""
    W2 = 2 * H
    (w21, b21), (w22, b22), (w23, b23) = params["l2"]
    # All heads are identical -> x_cat @ W == x @ (sum of head row-blocks).
    # NOTE: only valid while every head sees the same attention output.
    w21f = sum(w21[h * H:(h + 1) * H, :] for h in range(numb_multihead))
    (wc1, bc1), (wc2, bc2), (wc3, bc3) = params["coord"]

    wB1x = jnp.zeros((H, W2), jnp.float32).at[:, 0:H].set(w21f)
    wB1c = jnp.zeros((3, W2), jnp.float32).at[:, H:W2].set(wc1)
    bB1 = jnp.concatenate([b21, bc1]).reshape(1, W2)
    wB2 = jnp.zeros((W2, W2), jnp.float32)
    wB2 = wB2.at[0:H, 0:H].set(w22).at[H:W2, H:W2].set(wc2)
    bB2 = jnp.concatenate([b22, bc2]).reshape(1, W2)
    wB3 = jnp.zeros((W2, W2), jnp.float32)
    wB3 = wB3.at[0:H, 0:H].set(w23).at[H:W2, H:W2].set(wc3)
    bB3 = jnp.concatenate([b23, bc3]).reshape(1, W2)

    segs = [wB1x, wB1c, bB1, wB2, bB2, wB3, bB3]
    for i, (w, b) in enumerate(params["out"][:-1]):
        wt = jnp.zeros((W2, W2), jnp.float32).at[0:H, 0:H].set(w)
        if i == 0:                          # fold `y + c` into the first layer
            wt = wt.at[H:W2, 0:H].set(w)
        bt = jnp.zeros((1, W2), jnp.float32).at[0, 0:H].set(b)
        segs += [wt, bt]
    return _pack_rows(segs, W2)


def _pack_stage_out(params, H, n_tail, out_dim, out_pad):
    """Final Linear over the 2H-wide stage-B activation, out_pad-wide output."""
    W2 = 2 * H
    w, b = params["out"][-1]
    wo = jnp.zeros((W2, out_pad), jnp.float32).at[0:H, :out_dim].set(w)
    if n_tail == 0:                         # fold `y + c` into the final layer
        wo = wo.at[H:W2, :out_dim].set(w)
    bo = jnp.zeros((1, out_pad), jnp.float32).at[0, :out_dim].set(b)
    return _pack_rows([wo, bo], out_pad)


# --------------------------------- kernels -----------------------------------

def make_qkv_scores_kernel(offs_a, H, dq1, in_dim, m_real, tile_m, mask_rows,
                           mm_dtype):
    """Fused q1/q2/k/v branches (block-diagonal, 4H-lane matmuls) plus per-core
    partial score accumulation in a VMEM scratch.  Grid = (cores, row tiles)."""
    SW = 4 * H

    def dot(a, b):
        return jnp.dot(a.astype(mm_dtype), b.astype(mm_dtype),
                       preferred_element_type=jnp.float32)

    def kernel(fc_ref, ft_ref, wa_ref, v_ref, p_ref, acc_ref):
        # Layer 1: raw feature_coord / feature consumed directly against the
        # two packed row blocks of the first weight (no combined input slab).
        w1a = wa_ref[offs_a[0]:offs_a[0] + dq1, :]
        w1b = wa_ref[offs_a[1]:offs_a[1] + in_dim, :]
        b1 = wa_ref[offs_a[2]:offs_a[2] + 1, :]
        h = dot(fc_ref[...], w1a) + dot(ft_ref[...], w1b) + b1
        h = jnp.maximum(h, 0.0)                        # (TM, 4H): [q1|q2|k|v]
        w2 = wa_ref[offs_a[3]:offs_a[3] + SW, :]
        b2 = wa_ref[offs_a[4]:offs_a[4] + 1, :]
        h = jnp.maximum(dot(h, w2) + b2, 0.0)
        w3 = wa_ref[offs_a[5]:offs_a[5] + SW, :]
        b3 = wa_ref[offs_a[6]:offs_a[6] + 1, :]
        a3 = dot(h, w3) + b3                           # (TM, 4H): [q1-q2|k|v|0]
        q = a3[:, 0:H]
        k = a3[:, H:2 * H]
        v = a3[:, 2 * H:3 * H]

        if mask_rows:
            # Invariant: padded rows (M_pad != M) would carry relu(bias)
            # garbage.  q must be masked so they don't pollute the global score
            # sum; v is masked too so any downstream reduction over v_all rows
            # stays safe (out rows >= m_real are also sliced off wrapper-side).
            gt = pl.program_id(0) * pl.num_programs(1) + pl.program_id(1)
            row = gt * tile_m + lax.broadcasted_iota(jnp.int32, (tile_m, 1), 0)
            valid = row < m_real
            q = jnp.where(valid, q, 0.0)
            v = jnp.where(valid, v, 0.0)

        v_ref[...] = v

        t = pl.program_id(1)

        @pl.when(t == 0)
        def _():
            acc_ref[...] = jnp.zeros_like(acc_ref)

        # partial scores += q^T @ k, contracted directly (no transpose copy).
        acc_ref[...] += lax.dot_general(
            q.astype(mm_dtype), k.astype(mm_dtype), (((0,), (0,)), ((), ())),
            preferred_element_type=jnp.float32)

        @pl.when(t == pl.num_programs(1) - 1)
        def _():
            p_ref[0] = acc_ref[...]        # one clean store of this core's sum

    return kernel


def make_head_kernel(offs_b, offs_o, H, n_tail, mm_dtype):
    """Attention apply + fused layers2/layers_coord (block-diag, 2H lanes) +
    layers_out, row-parallel over M tiles."""
    W2 = 2 * H

    def dot(a, b):
        return jnp.dot(a.astype(mm_dtype), b.astype(mm_dtype),
                       preferred_element_type=jnp.float32)

    def kernel(v_ref, c_ref, p_ref, wb_ref, wo_ref, o_ref):
        # p_val = v @ p_attn^T without materializing p_attn.T.
        x = lax.dot_general(
            v_ref[...].astype(mm_dtype), p_ref[...].astype(mm_dtype),
            (((1,), (1,)), ((), ())), preferred_element_type=jnp.float32)
        # Fused [layers2 | layers_coord] chain; activations 2H wide.
        wB1x = wb_ref[offs_b[0]:offs_b[0] + H, :]
        wB1c = wb_ref[offs_b[1]:offs_b[1] + 3, :]
        bB1 = wb_ref[offs_b[2]:offs_b[2] + 1, :]
        h = jnp.maximum(dot(x, wB1x) + dot(c_ref[...], wB1c) + bB1, 0.0)
        wB2 = wb_ref[offs_b[3]:offs_b[3] + W2, :]
        bB2 = wb_ref[offs_b[4]:offs_b[4] + 1, :]
        h = jnp.maximum(dot(h, wB2) + bB2, 0.0)
        wB3 = wb_ref[offs_b[5]:offs_b[5] + W2, :]
        bB3 = wb_ref[offs_b[6]:offs_b[6] + 1, :]
        h = dot(h, wB3) + bB3                          # (TM, 2H) = [y | c]
        # layers_out hidden layers; the first one folds the (y + c) add.
        for i in range(n_tail):
            wt = wb_ref[offs_b[7 + 2 * i]:offs_b[7 + 2 * i] + W2, :]
            bt = wb_ref[offs_b[8 + 2 * i]:offs_b[8 + 2 * i] + 1, :]
            h = jnp.maximum(dot(h, wt) + bt, 0.0)
        wo = wo_ref[offs_o[0]:offs_o[0] + W2, :]
        bo = wo_ref[offs_o[1]:offs_o[1] + 1, :]
        o_ref[...] = dot(h, wo) + bo

    return kernel


# --------------------------------- wrapper -----------------------------------

def mlp_forward(feature, feature_coord, coord, params, *, in_dim, out_dim,
                hidden_list, numb_multihead, tile_m=2048,
                matmul_dtype=jnp.float32):
    assert len(set(hidden_list)) == 1, "packed kernels assume uniform hidden"
    H = hidden_list[0]
    assert H % 8 == 0
    n_tail = len(hidden_list) - 2
    dq1 = in_dim + 6

    shape = feature.shape[:-1]
    M = int(math.prod(shape))
    feat2 = feature.reshape(M, in_dim).astype(jnp.float32)
    fc2 = feature_coord.reshape(M, dq1).astype(jnp.float32)
    c2 = coord.reshape(M, 3).astype(jnp.float32)

    TM = min(tile_m, _round_up(M, 8))
    M_pad = _round_up(M, TM)
    T = M_pad // TM
    # Split the serialized score reduction across 2 TensorCores (v7x) whenever
    # the tile count allows; on 1-TC chips the extra axis just iterates.
    NC = 2 if (T >= 2 and T % 2 == 0) else 1
    T_per = T // NC

    def pad_rows(x):
        return x if M_pad == M else jnp.pad(x, ((0, M_pad - M), (0, 0)))

    fc_p, ft_p, c_p = pad_rows(fc2), pad_rows(feat2), pad_rows(c2)

    slab_a, offs_a = _pack_stage_a(params, in_dim, H)
    slab_b, offs_b = _pack_stage_b(params, H, numb_multihead, n_tail)
    OUT_PAD = _round_up(out_dim, 8)   # narrow output: avoid 128-wide write amp
    slab_o, offs_o = _pack_stage_out(params, H, n_tail, out_dim, OUT_PAD)

    # ---- kernel 1: fused q/k/v branches + per-core partial score matrices --
    v_all, p_part = pl.pallas_call(
        make_qkv_scores_kernel(offs_a, H, dq1, in_dim, M, TM, M_pad != M,
                               matmul_dtype),
        grid=(NC, T_per),
        in_specs=[
            pl.BlockSpec((TM, dq1), lambda c, t: (c * T_per + t, 0)),
            pl.BlockSpec((TM, in_dim), lambda c, t: (c * T_per + t, 0)),
            pl.BlockSpec(slab_a.shape, lambda c, t: (0, 0)),
        ],
        out_specs=(
            pl.BlockSpec((TM, H), lambda c, t: (c * T_per + t, 0)),
            pl.BlockSpec((1, H, H), lambda c, t: (c, 0, 0)),
        ),
        out_shape=(
            jax.ShapeDtypeStruct((M_pad, H), jnp.float32),
            jax.ShapeDtypeStruct((NC, H, H), jnp.float32),
        ),
        scratch_shapes=[pltpu.VMEM((H, H), jnp.float32)],
        compiler_params=pltpu.CompilerParams(
            dimension_semantics=("parallel", "arbitrary"),
            vmem_limit_bytes=32 * 1024 * 1024),
    )(fc_p, ft_p, slab_a)

    # Tiny (NC, H, H) partial-sum + exact softmax as a plain XLA op.
    p_attn = jax.nn.softmax(jnp.sum(p_part, axis=0), axis=-1)

    # ---- kernel 2: attention apply + fused layers2/coord + layers_out ------
    out = pl.pallas_call(
        make_head_kernel(offs_b, offs_o, H, n_tail, matmul_dtype),
        grid=(T,),
        in_specs=[
            pl.BlockSpec((TM, H), lambda t: (t, 0)),
            pl.BlockSpec((TM, 3), lambda t: (t, 0)),
            pl.BlockSpec((H, H), lambda t: (0, 0)),
            pl.BlockSpec(slab_b.shape, lambda t: (0, 0)),
            pl.BlockSpec(slab_o.shape, lambda t: (0, 0)),
        ],
        out_specs=pl.BlockSpec((TM, OUT_PAD), lambda t: (t, 0)),
        out_shape=jax.ShapeDtypeStruct((M_pad, OUT_PAD), jnp.float32),
        compiler_params=pltpu.CompilerParams(
            dimension_semantics=("parallel",),         # both TCs on v7x
            vmem_limit_bytes=32 * 1024 * 1024),
    )(v_all, c_p, p_attn, slab_b, slab_o)

    return out[:M, :out_dim].reshape(*shape, out_dim)


# -------------------------- pure-JAX reference check -------------------------

def mlp_reference(feature, feature_coord, coord, params, *, out_dim,
                  numb_multihead):
    hi = jax.lax.Precision.HIGHEST
    shape = feature.shape[:-1]
    M = int(math.prod(shape))
    feat2 = feature.reshape(M, -1)
    fc2 = feature_coord.reshape(M, -1)
    c2 = coord.reshape(M, -1)

    def seq(x, layers):
        for i, (w, b) in enumerate(layers):
            x = jnp.dot(x, w, precision=hi) + b
            if i < len(layers) - 1:
                x = jnp.maximum(x, 0.0)
        return x

    q1 = seq(fc2, params["q1"])
    q2 = seq(feat2, params["q2"])
    k = seq(feat2, params["k"])
    v = seq(feat2, params["v"])
    scores = jnp.dot((q1 - q2).T, k, precision=hi)
    p_attn = jax.nn.softmax(scores, axis=-1)
    x = jnp.dot(p_attn, v.T, precision=hi).T
    x_cat = jnp.concatenate([x] * numb_multihead, axis=-1)
    y = seq(x_cat, params["l2"])
    c = seq(c2, params["coord"])
    o = seq(y + c, params["out"])
    return o.reshape(*shape, out_dim)


# ------------------------------------ main ------------------------------------

if __name__ == "__main__":
    in_dim = 4
    out_dim = 3
    hidden_list = [32, 32, 32]     # [:2] for the branches, [2:] for layers_out
    numb_multihead = 2

    key = jax.random.PRNGKey(0)
    kp = jax.random.fold_in(key, 1)
    params = init_mlp_params(kp, in_dim, out_dim, hidden_list, numb_multihead)

    def check(B, N, tile_m):
        kf, kfc, kc = jax.random.split(jax.random.fold_in(key, B * N + 7), 3)
        feature = jax.random.normal(kf, (B, N, in_dim), jnp.float32)
        feature_coord = jax.random.normal(kfc, (B, N, in_dim + 6), jnp.float32)
        coord = jax.random.normal(kc, (B, N, 3), jnp.float32)

        out = jax.block_until_ready(
            mlp_forward(feature, feature_coord, coord, params,
                        in_dim=in_dim, out_dim=out_dim,
                        hidden_list=hidden_list,
                        numb_multihead=numb_multihead, tile_m=tile_m))
        assert out.shape == (B, N, out_dim)

        ref = jax.block_until_ready(
            mlp_reference(feature, feature_coord, coord, params,
                          out_dim=out_dim, numb_multihead=numb_multihead))
        # Loose tolerance: covers default-precision MXU matmuls vs the
        # HIGHEST-precision reference; any packing bug would be O(1) off.
        err = float(jnp.max(jnp.abs(out - ref)) /
                    (jnp.max(jnp.abs(ref)) + 1e-6))
        assert err < 0.1, f"mismatch (B={B}, N={N}): rel-to-max err={err:.3e}"

    # Primary small case: single tile, single core.
    check(B=2, N=64, tile_m=2048)
    # Multi-tile case: exercises the 2-core partial-score split, cross-tile
    # score accumulation and padded-row masking (M=1800 -> M_pad=2048, T=4).
    check(B=2, N=900, tile_m=512)

    print("KERNEL_OK")
</pallas_src>

<mosaic_0001>
module attributes {stable_mosaic.version = 11 : i64} {
  func.func @kernel(%arg0: i32, %arg1: i32, %arg2: memref<128x10xf32, #tpu.memory_space<vmem>>, %arg3: memref<128x4xf32, #tpu.memory_space<vmem>>, %arg4: memref<304x128xf32, #tpu.memory_space<vmem>>, %arg5: memref<128x32xf32, #tpu.memory_space<vmem>>, %arg6: memref<1x32x32xf32, #tpu.memory_space<vmem>>, %arg7: memref<32x32xf32, #tpu.memory_space<vmem>>) attributes {dimension_semantics = [#tpu.dimension_semantics<parallel>, #tpu.dimension_semantics<arbitrary>], iteration_bounds = array<i64: 1, 1>, scalar_prefetch = 0 : i64, scratch_operands = 1 : i64, tpu.core_type = #tpu.core_type<tc>, window_params = [{transform_indices = @transform_0, window_bounds = array<i64: 128, 10>}, {transform_indices = @transform_1, window_bounds = array<i64: 128, 4>}, {pipeline_mode = #tpu.pipeline_mode<synchronous>, transform_indices = @transform_2, window_bounds = array<i64: 304, 128>}, {transform_indices = @transform_3, window_bounds = array<i64: 128, 32>}, {transform_indices = @transform_4, window_bounds = array<i64: 1, 32, 32>}]} {
    %c0 = arith.constant 0 : index
    %c0_0 = arith.constant 0 : index
    %0 = vector.load %arg4[%c0, %c0_0] : memref<304x128xf32, #tpu.memory_space<vmem>>, vector<10x128xf32>
    %c16 = arith.constant 16 : index
    %c0_1 = arith.constant 0 : index
    %1 = vector.load %arg4[%c16, %c0_1] : memref<304x128xf32, #tpu.memory_space<vmem>>, vector<4x128xf32>
    %c24 = arith.constant 24 : index
    %c0_2 = arith.constant 0 : index
    %2 = vector.load %arg4[%c24, %c0_2] : memref<304x128xf32, #tpu.memory_space<vmem>>, vector<1x128xf32>
    %c0_3 = arith.constant 0 : index
    %c0_4 = arith.constant 0 : index
    %3 = vector.load %arg2[%c0_3, %c0_4] : memref<128x10xf32, #tpu.memory_space<vmem>>, vector<128x10xf32>
    %cst = arith.constant dense<0.000000e+00> : vector<128x128xf32>
    %4 = tpu.matmul %3, %0, %cst {dimension_numbers = #tpu.dot_dimension_numbers<[1], [0], [0], [1], [0, 0, 1, 1], [], []>} : vector<128x10xf32>, vector<10x128xf32>, vector<128x128xf32> -> vector<128x128xf32>
    %c0_5 = arith.constant 0 : index
    %c0_6 = arith.constant 0 : index
    %5 = vector.load %arg3[%c0_5, %c0_6] : memref<128x4xf32, #tpu.memory_space<vmem>>, vector<128x4xf32>
    %cst_7 = arith.constant dense<0.000000e+00> : vector<128x128xf32>
    %6 = tpu.matmul %5, %1, %cst_7 {dimension_numbers = #tpu.dot_dimension_numbers<[1], [0], [0], [1], [0, 0, 1, 1], [], []>} : vector<128x4xf32>, vector<4x128xf32>, vector<128x128xf32> -> vector<128x128xf32>
    %7 = arith.addf %4, %6 : vector<128x128xf32>
    %8 = vector.broadcast %2 : vector<1x128xf32> to vector<128x128xf32>
    %9 = arith.addf %7, %8 : vector<128x128xf32>
    %cst_8 = arith.constant 0.000000e+00 : f32
    %10 = vector.broadcast %cst_8 : f32 to vector<128x128xf32>
    %11 = arith.maximumf %9, %10 : vector<128x128xf32>
    %c32 = arith.constant 32 : index
    %c0_9 = arith.constant 0 : index
    %12 = vector.load %arg4[%c32, %c0_9] : memref<304x128xf32, #tpu.memory_space<vmem>>, vector<128x128xf32>
    %c160 = arith.constant 160 : index
    %c0_10 = arith.constant 0 : index
    %13 = vector.load %arg4[%c160, %c0_10] : memref<304x128xf32, #tpu.memory_space<vmem>>, vector<1x128xf32>
    %cst_11 = arith.constant dense<0.000000e+00> : vector<128x128xf32>
    %14 = tpu.matmul %11, %12, %cst_11 {dimension_numbers = #tpu.dot_dimension_numbers<[1], [0], [0], [1], [0, 0, 1, 1], [], []>} : vector<128x128xf32>, vector<128x128xf32>, vector<128x128xf32> -> vector<128x128xf32>
    %15 = vector.broadcast %13 : vector<1x128xf32> to vector<128x128xf32>
    %16 = arith.addf %14, %15 : vector<128x128xf32>
    %cst_12 = arith.constant 0.000000e+00 : f32
    %17 = vector.broadcast %cst_12 : f32 to vector<128x128xf32>
    %18 = arith.maximumf %16, %17 : vector<128x128xf32>
    %c168 = arith.constant 168 : index
    %c0_13 = arith.constant 0 : index
    %19 = vector.load %arg4[%c168, %c0_13] : memref<304x128xf32, #tpu.memory_space<vmem>>, vector<128x128xf32>
    %c296 = arith.constant 296 : index
    %c0_14 = arith.constant 0 : index
    %20 = vector.load %arg4[%c296, %c0_14] : memref<304x128xf32, #tpu.memory_space<vmem>>, vector<1x128xf32>
    %cst_15 = arith.constant dense<0.000000e+00> : vector<128x128xf32>
    %21 = tpu.matmul %18, %19, %cst_15 {dimension_numbers = #tpu.dot_dimension_numbers<[1], [0], [0], [1], [0, 0, 1, 1], [], []>} : vector<128x128xf32>, vector<128x128xf32>, vector<128x128xf32> -> vector<128x128xf32>
    %22 = vector.broadcast %20 : vector<1x128xf32> to vector<128x128xf32>
    %23 = arith.addf %21, %22 : vector<128x128xf32>
    %24 = vector.extract_strided_slice %23 {offsets = [0, 0], sizes = [128, 32], strides = [1, 1]} : vector<128x128xf32> to vector<128x32xf32>
    %25 = vector.extract_strided_slice %23 {offsets = [0, 32], sizes = [128, 32], strides = [1, 1]} : vector<128x128xf32> to vector<128x32xf32>
    %26 = vector.extract_strided_slice %23 {offsets = [0, 64], sizes = [128, 32], strides = [1, 1]} : vector<128x128xf32> to vector<128x32xf32>
    %c0_16 = arith.constant 0 : index
    %c0_17 = arith.constant 0 : index
    %27 = vector.load %arg5[%c0_16, %c0_17] : memref<128x32xf32, #tpu.memory_space<vmem>>, vector<128x32xf32>
    tpu.vector_store %arg5[%c0_16, %c0_17], %26 {strides = array<i32>} : memref<128x32xf32, #tpu.memory_space<vmem>>, vector<128x32xf32>,
    %c0_i32 = arith.constant 0 : i32
    %28 = arith.cmpi eq, %arg1, %c0_i32 : i32
    %29 = arith.extui %28 : i1 to i32
    %c0_i32_18 = arith.constant 0 : i32
    %30 = arith.cmpi ne, %29, %c0_i32_18 : i32
    scf.if %30 {
      %cst_26 = arith.constant 0.000000e+00 : f32
      %38 = vector.broadcast %cst_26 : f32 to vector<32x32xf32>
      %c0_27 = arith.constant 0 : index
      %c0_28 = arith.constant 0 : index
      %39 = vector.load %arg7[%c0_27, %c0_28] : memref<32x32xf32, #tpu.memory_space<vmem>>, vector<32x32xf32>
      tpu.vector_store %arg7[%c0_27, %c0_28], %38 {strides = array<i32>} : memref<32x32xf32, #tpu.memory_space<vmem>>, vector<32x32xf32>,
    } else {
    }
    %c0_19 = arith.constant 0 : index
    %c0_20 = arith.constant 0 : index
    %31 = vector.load %arg7[%c0_19, %c0_20] : memref<32x32xf32, #tpu.memory_space<vmem>>, vector<32x32xf32>
    %cst_21 = arith.constant dense<0.000000e+00> : vector<32x32xf32>
    %32 = tpu.matmul %24, %25, %cst_21 {dimension_numbers = #tpu.dot_dimension_numbers<[0], [0], [1], [1], [0, 1, 1, 1], [], []>} : vector<128x32xf32>, vector<128x32xf32>, vector<32x32xf32> -> vector<32x32xf32>
    %33 = arith.addf %31, %32 : vector<32x32xf32>
    %c0_22 = arith.constant 0 : index
    %c0_23 = arith.constant 0 : index
    %34 = vector.load %arg7[%c0_22, %c0_23] : memref<32x32xf32, #tpu.memory_space<vmem>>, vector<32x32xf32>
    tpu.vector_store %arg7[%c0_22, %c0_23], %33 {strides = array<i32>} : memref<32x32xf32, #tpu.memory_space<vmem>>, vector<32x32xf32>,
    %c0_i32_24 = arith.constant 0 : i32
    %35 = arith.cmpi eq, %arg1, %c0_i32_24 : i32
    %36 = arith.extui %35 : i1 to i32
    %c0_i32_25 = arith.constant 0 : i32
    %37 = arith.cmpi ne, %36, %c0_i32_25 : i32
    scf.if %37 {
      %c0_26 = arith.constant 0 : index
      %c0_27 = arith.constant 0 : index
      %38 = vector.load %arg7[%c0_26, %c0_27] : memref<32x32xf32, #tpu.memory_space<vmem>>, vector<32x32xf32>
      %c0_28 = arith.constant 0 : index
      %c0_29 = arith.constant 0 : index
      %c0_30 = arith.constant 0 : index
      %39 = vector.load %arg6[%c0_28, %c0_29, %c0_30] : memref<1x32x32xf32, #tpu.memory_space<vmem>>, vector<1x32x32xf32>
      %40 = vector.shape_cast %39 : vector<1x32x32xf32> to vector<32x32xf32>
      %41 = vector.shape_cast %38 : vector<32x32xf32> to vector<1x32x32xf32>
      tpu.vector_store %arg6[%c0_28, %c0_29, %c0_30], %41 {strides = array<i32>} : memref<1x32x32xf32, #tpu.memory_space<vmem>>, vector<1x32x32xf32>,
    } else {
    }
    return
  }
  func.func @transform_0(%arg0: i32, %arg1: i32) -> (i32, i32) {
    %c1_i32 = arith.constant 1 : i32
    %0 = arith.muli %arg0, %c1_i32 : i32
    %1 = arith.addi %0, %arg1 : i32
    %c0_i32 = arith.constant 0 : i32
    %c0_i32_0 = arith.constant 0 : i32
    return %1, %c0_i32 : i32, i32
  }
  func.func @transform_1(%arg0: i32, %arg1: i32) -> (i32, i32) {
    %c1_i32 = arith.constant 1 : i32
    %0 = arith.muli %arg0, %c1_i32 : i32
    %1 = arith.addi %0, %arg1 : i32
    %c0_i32 = arith.constant 0 : i32
    %c0_i32_0 = arith.constant 0 : i32
    return %1, %c0_i32 : i32, i32
  }
  func.func @transform_2(%arg0: i32, %arg1: i32) -> (i32, i32) {
    %c0_i32 = arith.constant 0 : i32
    %c0_i32_0 = arith.constant 0 : i32
    %c0_i32_1 = arith.constant 0 : i32
    return %c0_i32, %c0_i32_0 : i32, i32
  }
  func.func @transform_3(%arg0: i32, %arg1: i32) -> (i32, i32) {
    %c1_i32 = arith.constant 1 : i32
    %0 = arith.muli %arg0, %c1_i32 : i32
    %1 = arith.addi %0, %arg1 : i32
    %c0_i32 = arith.constant 0 : i32
    %c0_i32_0 = arith.constant 0 : i32
    return %1, %c0_i32 : i32, i32
  }
  func.func @transform_4(%arg0: i32, %arg1: i32) -> (i32, i32, i32) {
    %c0_i32 = arith.constant 0 : i32
    %c0_i32_0 = arith.constant 0 : i32
    %c0_i32_1 = arith.constant 0 : i32
    return %arg0, %c0_i32, %c0_i32_0 : i32, i32, i32
  }
}

</mosaic_0001>

<llo_original>
// kernel: tpu_custom_call.1
$region0: #{tpu_custom_call.1}
  #allocation0 [shape = 'u32[]', space=smem, size = 0x4, offset = 0x4, fixed_abs, tag = 'smem constant byte address 0x4 - core index']
  #allocation1 [shape = 'u32[144,128]{1,0:T(1,128)}', space=vmem, size = 0x12000, scoped, tag = 'internal scratch']
  #allocation2 [shape = 'f32[32,32]{1,0:T(8,128)}', space=vmem, size = 0x4000, scoped, tag = 'scratch operand']
  %s0 = inlined_call_operand.vmem [shape: f32[128,10], index: 0, kind: input, shape index: {}]
  %s1 = inlined_call_operand.vmem [shape: f32[128,4], index: 1, kind: input, shape index: {}]
  %s2 = inlined_call_operand.hbm [shape: f32[304,128], index: 2, kind: input, shape index: {}]
  %s3 = inlined_call_operand.vmem [shape: f32[128,32], index: 3, kind: output, shape index: {0}]
  %s4 = inlined_call_operand.hbm [shape: f32[1,32,32], index: 4, kind: output, shape index: {1}]
  %5 = xla_tuple %s3, %s4
  %s6 = sld [smem:[#allocation0]]
  $region42: #{tpu_custom_call.1} parent=0
    _
  %s8 = ssub.s32 1, %s6
  %s9 = scalar_select 0, %s8, %s6
  $region1: #{tpu_custom_call.1} parent=0
    #allocation3 [shape = 'u8[155648]{0}', space=vmem, size = 0x26000, scoped, tag = 'input window, operand 2, single buffered']
    #allocation4 [shape = 's32[1]{0}', space=sflag, size = 0x4, scoped, tag = 'scoped memory for tpu_custom_call.1']
    #allocation5 [shape = 's32[1]{0}', space=sflag, size = 0x4, scoped, tag = 'scoped memory for tpu_custom_call.1']
    #allocation6 [shape = 'u8[16384]{0}', space=vmem, size = 0x4000, scoped, tag = 'output window, operand 1, single buffered']
    %10 = vsyncpa [#allocation4], 0
    %11 = vsyncpa [#allocation5], 0
    // Predicated region
    $region2: #{tpu_custom_call.1} parent=1 // pred_check
      _
    $region3: #{tpu_custom_call.1} parent=1 // pred_check_branch
      %13 = sbr.rel (0) target = $region5
    $region4: #{tpu_custom_call.1} parent=1 // pred_region
      %s14 = sadd.s32 0, 0
      %s15 = smul.u32 16, %s14
      %p16 = scmp.lt.s32.totalorder %s15, 15
      %s17 = scalar_select %p16, %s15, 15
      %s18 = smul.addr %s17, 8
      %s19 = scalar_lea.vmem %s0, %s18
      %s20 = sadd.s32 0, 0
      %s21 = smul.u32 16, %s20
    $region5: #{tpu_custom_call.1} parent=1 // pred_fallthru
      _
    // Predicated region
    $region6: #{tpu_custom_call.1} parent=1 // pred_check
      _
    $region7: #{tpu_custom_call.1} parent=1 // pred_check_branch
      %23 = sbr.rel (0) target = $region9
    $region8: #{tpu_custom_call.1} parent=1 // pred_region
      %s24 = sadd.s32 0, 0
      %s25 = smul.u32 16, %s24
      %p26 = scmp.lt.s32.totalorder %s25, 15
      %s27 = scalar_select %p26, %s25, 15
      %s28 = smul.addr %s27, 8
      %s29 = scalar_lea.vmem %s1, %s28
      %s30 = sadd.s32 0, 0
      %s31 = smul.u32 16, %s30
    $region9: #{tpu_custom_call.1} parent=1 // pred_fallthru
      _
    // Predicated region
    $region10: #{tpu_custom_call.1} parent=1 // pred_check
      _
    $region11: #{tpu_custom_call.1} parent=1 // pred_check_branch
      %33 = sbr.rel (0) target = $region13
    $region12: #{tpu_custom_call.1} parent=1 // pred_region
      %s35 = ssub.s32 4864, 4864
      %36 = vsyncadd [#allocation4], %s35
      %s37 = sshll.u32 [#allocation3], 4
      %s38 = int_to_ptr.vmem [resolvable:$true] %s37
      %43 = dma.hbm_to_vmem [thread:$0]  %s2, 4864, %s38, [#allocation4], 128, 128, 8
    $region13: #{tpu_custom_call.1} parent=1 // pred_fallthru
      _
    // Predicated region
    $region14: #{tpu_custom_call.1} parent=1 // pred_check
      _
    $region15: #{tpu_custom_call.1} parent=1 // pred_check_branch
      %45 = sbr.rel (0) target = $region17
    $region16: #{tpu_custom_call.1} parent=1 // pred_region
      %46 = dma.done [#allocation4], 4864
    $region17: #{tpu_custom_call.1} parent=1 // pred_fallthru
      _
    %s47 = sadd.s32 0, 0
    %s48 = smul.u32 16, %s47
    %p49 = scmp.lt.s32.totalorder %s48, 15
    %s50 = scalar_select %p49, %s48, 15
    %s51 = smul.addr %s50, 8
    %s52 = scalar_lea.vmem %s0, %s51
    %s53 = sadd.s32 0, 0
    %s54 = smul.u32 16, %s53
    %p55 = scmp.lt.s32.totalorder %s54, 15
    %s56 = scalar_select %p55, %s54, 15
    %s57 = smul.addr %s56, 8
    %s58 = scalar_lea.vmem %s1, %s57
    %s59 = sadd.s32 0, 0
    %s60 = smul.u32 16, %s59
    %p61 = scmp.lt.s32.totalorder %s60, 15
    %s62 = scalar_select %p61, %s60, 15
    %s63 = smul.addr %s62, 8
    %s64 = scalar_lea.vmem %s3, %s63
    %s65 = sadd.s32 0, 0
    %s66 = smul.u32 16, %s65
    %p67 = scmp.lt.s32.totalorder %s66, 15
    %s68 = scalar_select %p67, %s66, 15
    %s69 = smul.addr %s68, 8
    %s70 = scalar_lea.vmem %s0, %s69
    %s71 = sadd.s32 0, 0
    %s72 = smul.u32 16, %s71
    %s73 = sadd.s32 0, 0
    %s74 = smul.u32 16, %s73
    %p75 = scmp.lt.s32.totalorder %s74, 15
    %s76 = scalar_select %p75, %s74, 15
    %s77 = smul.addr %s76, 8
    %s78 = scalar_lea.vmem %s1, %s77
    %s79 = sadd.s32 0, 0
    %s80 = smul.u32 16, %s79
    %s81 = sadd.s32 0, 0
    %s82 = smul.u32 16, %s81
    %p83 = scmp.lt.s32.totalorder %s82, 15
    %s84 = scalar_select %p83, %s82, 15
    %s85 = smul.addr %s84, 8
    %s86 = scalar_lea.vmem %s3, %s85
    %s87 = sadd.s32 0, 0
    %s88 = smul.u32 16, %s87
    %v89 = vld [vmem:[#allocation3] sm:$0xff]
    %v90 = vld [vmem:[#allocation3 + $0x8] sm:$0x3]
    %v91 = vld [vmem:[#allocation3 + $0x10] sm:$0xf]
    %v92 = vld [vmem:[#allocation3 + $0x18] sm:$0x1]
    %v93 = vld [vmem:[%s70] sm:$0xff]
    %v94 = vld [vmem:[%s70 + $0x8] sm:$0xff]
    %v95 = vld [vmem:[%s70 + $0x10] sm:$0xff]
    %v96 = vld [vmem:[%s70 + $0x18] sm:$0xff]
    %v97 = vld [vmem:[%s70 + $0x20] sm:$0xff]
    %v98 = vld [vmem:[%s70 + $0x28] sm:$0xff]
    %v99 = vld [vmem:[%s70 + $0x30] sm:$0xff]
    %v100 = vld [vmem:[%s70 + $0x38] sm:$0xff]
    %v101 = vld [vmem:[%s70 + $0x40] sm:$0xff]
    %v102 = vld [vmem:[%s70 + $0x48] sm:$0xff]
    %v103 = vld [vmem:[%s70 + $0x50] sm:$0xff]
    %v104 = vld [vmem:[%s70 + $0x58] sm:$0xff]
    %v105 = vld [vmem:[%s70 + $0x60] sm:$0xff]
    %v106 = vld [vmem:[%s70 + $0x68] sm:$0xff]
    %v107 = vld [vmem:[%s70 + $0x70] sm:$0xff]
    %v108 = vld [vmem:[%s70 + $0x78] sm:$0xff]
    %v109 = vld [vmem:[%s78] sm:$0xff]
    %v110 = vld [vmem:[%s78 + $0x8] sm:$0xff]
    %v111 = vld [vmem:[%s78 + $0x10] sm:$0xff]
    %v112 = vld [vmem:[%s78 + $0x18] sm:$0xff]
    %v113 = vld [vmem:[%s78 + $0x20] sm:$0xff]
    %v114 = vld [vmem:[%s78 + $0x28] sm:$0xff]
    %v115 = vld [vmem:[%s78 + $0x30] sm:$0xff]
    %v116 = vld [vmem:[%s78 + $0x38] sm:$0xff]
    %v117 = vld [vmem:[%s78 + $0x40] sm:$0xff]
    %v118 = vld [vmem:[%s78 + $0x48] sm:$0xff]
    %v119 = vld [vmem:[%s78 + $0x50] sm:$0xff]
    %v120 = vld [vmem:[%s78 + $0x58] sm:$0xff]
    %v121 = vld [vmem:[%s78 + $0x60] sm:$0xff]
    %v122 = vld [vmem:[%s78 + $0x68] sm:$0xff]
    %v123 = vld [vmem:[%s78 + $0x70] sm:$0xff]
    %v124 = vld [vmem:[%s78 + $0x78] sm:$0xff]
    %vm125 = vcmask 31744
    %v127 = vsel %vm125, %v109, 0
    %v130 = vsel %vm125, %v110, 0
    %v133 = vsel %vm125, %v111, 0
    %v136 = vsel %vm125, %v112, 0
    %v139 = vsel %vm125, %v113, 0
    %v142 = vsel %vm125, %v114, 0
    %v145 = vsel %vm125, %v115, 0
    %v148 = vsel %vm125, %v116, 0
    %v151 = vsel %vm125, %v117, 0
    %v154 = vsel %vm125, %v118, 0
    %v157 = vsel %vm125, %v119, 0
    %v160 = vsel %vm125, %v120, 0
    %v163 = vsel %vm125, %v121, 0
    %v166 = vsel %vm125, %v122, 0
    %v169 = vsel %vm125, %v123, 0
    %v172 = vsel %vm125, %v124, 0
    %vm174 = vcmask 1043456
    %v176 = vsel %vm174, %v91, 0
    %178 = vmatprep.subr.mxu0 0.0
    %179 = vmatpush1.msra.mxu0 %v176
    %180 = vmatprep.subr.mxu0 0.0
    %181 = vmatpush1.msra.mxu0 0.0
    %182 = vmatprep.subr.mxu0 0.0
    %183 = vmatpush1.msra.mxu0 0.0
    %184 = vmatprep.subr.mxu0 0.0
    %185 = vmatpush1.msra.mxu0 0.0
    %186 = vmatprep.subr.mxu0 0.0
    %187 = vmatpush1.msra.mxu0 0.0
    %188 = vmatprep.subr.mxu0 0.0
    %189 = vmatpush1.msra.mxu0 0.0
    %190 = vmatprep.subr.mxu0 0.0
    %191 = vmatpush1.msra.mxu0 0.0
    %192 = vmatprep.subr.mxu0 0.0
    %193 = vmatpush1.msra.mxu0 0.0
    %194 = vmatprep.subr.mxu0 0.0
    %195 = vmatpush1.msra.mxu0 0.0
    %196 = vmatprep.subr.mxu0 0.0
    %197 = vmatpush1.msra.mxu0 0.0
    %198 = vmatprep.subr.mxu0 0.0
    %199 = vmatpush1.msra.mxu0 0.0
    %200 = vmatprep.subr.mxu0 0.0
    %201 = vmatpush1.msra.mxu0 0.0
    %202 = vmatprep.subr.mxu0 0.0
    %203 = vmatpush1.msra.mxu0 0.0
    %204 = vmatprep.subr.mxu0 0.0
    %205 = vmatpush1.msra.mxu0 0.0
    %206 = vmatprep.subr.mxu0 0.0
    %207 = vmatpush1.msra.mxu0 0.0
    %208 = vmatprep.subr.mxu0 0.0
    %209 = vmatpush1.msra.mxu0 0.0
    %210 = vmatprep.subr.mxu0 0.0
    %211 = vmatpush1.msra.mxu0 0.0
    %212 = vmatprep.subr.mxu0 0.0
    %213 = vmatpush1.msra.mxu0 0.0
    %214 = vmatprep.subr.mxu0 0.0
    %215 = vmatpush1.msra.mxu0 0.0
    %216 = vmatprep.subr.mxu0 0.0
    %217 = vmatpush1.msra.mxu0 0.0
    %218 = vmatprep.subr.mxu0 0.0
    %219 = vmatpush1.msra.mxu0 0.0
    %220 = vmatprep.subr.mxu0 0.0
    %221 = vmatpush1.msra.mxu0 0.0
    %222 = vmatprep.subr.mxu0 0.0
    %223 = vmatpush1.msra.mxu0 0.0
    %224 = vmatprep.subr.mxu0 0.0
    %225 = vmatpush1.msra.mxu0 0.0
    %226 = vmatprep.subr.mxu0 0.0
    %227 = vmatpush1.msra.mxu0 0.0
    %228 = vmatprep.subr.mxu0 0.0
    %229 = vmatpush1.msra.mxu0 0.0
    %230 = vmatprep.subr.mxu0 0.0
    %231 = vmatpush1.msra.mxu0 0.0
    %232 = vmatprep.subr.mxu0 0.0
    %233 = vmatpush1.msra.mxu0 0.0
    %234 = vmatprep.subr.mxu0 0.0
    %235 = vmatpush1.msra.mxu0 0.0
    %236 = vmatprep.subr.mxu0 0.0
    %237 = vmatpush1.msra.mxu0 0.0
    %238 = vmatprep.subr.mxu0 0.0
    %239 = vmatpush1.msra.mxu0 0.0
    %240 = vmatprep.subr.mxu0 0.0
    %241 = vmatpush1.msra.mxu0 0.0
    %242 = vmatprep.mubr.f32.mxu0 0.0
    %243 = vmatmul.mubr.f32.gmra.mrb[0].mxu0 %v127
    %v244 = vpop.f32.mrb[0].mxu0
    %v245 = vadd.f32 0.0, %v244
    %v246 = vpop.f32.mrb[0].mxu0
    %247 = vmatprep.mubr.f32.mxu0 0.0
    %248 = vmatmul.mubr.f32.gmra.mrb[0].mxu0 %v130
    %v249 = vpop.f32.mrb[0].mxu0
    %v250 = vadd.f32 0.0, %v249
    %v251 = vpop.f32.mrb[0].mxu0
    %252 = vmatprep.mubr.f32.mxu0 0.0
    %253 = vmatmul.mubr.f32.gmra.mrb[0].mxu0 %v133
    %v254 = vpop.f32.mrb[0].mxu0
    %v255 = vadd.f32 0.0, %v254
    %v256 = vpop.f32.mrb[0].mxu0
    %257 = vmatprep.mubr.f32.mxu0 0.0
    %258 = vmatmul.mubr.f32.gmra.mrb[0].mxu0 %v136
    %v259 = vpop.f32.mrb[0].mxu0
    %v260 = vadd.f32 0.0, %v259
    %v261 = vpop.f32.mrb[0].mxu0
    %262 = vmatprep.mubr.f32.mxu0 0.0
    %263 = vmatmul.mubr.f32.gmra.mrb[0].mxu0 %v139
    %v264 = vpop.f32.mrb[0].mxu0
    %v265 = vadd.f32 0.0, %v264
    %v266 = vpop.f32.mrb[0].mxu0
    %267 = vmatprep.mubr.f32.mxu0 0.0
    %268 = vmatmul.mubr.f32.gmra.mrb[0].mxu0 %v142
    %v269 = vpop.f32.mrb[0].mxu0
    %v270 = vadd.f32 0.0, %v269
    %v271 = vpop.f32.mrb[0].mxu0
    %272 = vmatprep.mubr.f32.mxu0 0.0
    %273 = vmatmul.mubr.f32.gmra.mrb[0].mxu0 %v145
    %v274 = vpop.f32.mrb[0].mxu0
    %v275 = vadd.f32 0.0, %v274
    %v276 = vpop.f32.mrb[0].mxu0
    %277 = vmatprep.mubr.f32.mxu0 0.0
    %278 = vmatmul.mubr.f32.gmra.mrb[0].mxu0 %v148
    %v279 = vpop.f32.mrb[0].mxu0
    %v280 = vadd.f32 0.0, %v279
    %v281 = vpop.f32.mrb[0].mxu0
    %282 = vmatprep.mubr.f32.mxu0 0.0
    %283 = vmatmul.mubr.f32.gmra.mrb[0].mxu0 %v151
    %v284 = vpop.f32.mrb[0].mxu0
    %v285 = vadd.f32 0.0, %v284
    %v286 = vpop.f32.mrb[0].mxu0
    %287 = vmatprep.mubr.f32.mxu0 0.0
    %288 = vmatmul.mubr.f32.gmra.mrb[0].mxu0 %v154
    %v289 = vpop.f32.mrb[0].mxu0
    %v290 = vadd.f32 0.0, %v289
    %v291 = vpop.f32.mrb[0].mxu0
    %292 = vmatprep.mubr.f32.mxu0 0.0
    %293 = vmatmul.mubr.f32.gmra.mrb[0].mxu0 %v157
    %v294 = vpop.f32.mrb[0].mxu0
    %v295 = vadd.f32 0.0, %v294
    %v296 = vpop.f32.mrb[0].mxu0
    %297 = vmatprep.mubr.f32.mxu0 0.0
    %298 = vmatmul.mubr.f32.gmra.mrb[0].mxu0 %v160
    %v299 = vpop.f32.mrb[0].mxu0
    %v300 = vadd.f32 0.0, %v299
    %v301 = vpop.f32.mrb[0].mxu0
    %302 = vmatprep.mubr.f32.mxu0 0.0
    %303 = vmatmul.mubr.f32.gmra.mrb[0].mxu0 %v163
    %v304 = vpop.f32.mrb[0].mxu0
    %v305 = vadd.f32 0.0, %v304
    %v306 = vpop.f32.mrb[0].mxu0
    %307 = vmatprep.mubr.f32.mxu0 0.0
    %308 = vmatmul.mubr.f32.gmra.mrb[0].mxu0 %v166
    %v309 = vpop.f32.mrb[0].mxu0
    %v310 = vadd.f32 0.0, %v309
    %v311 = vpop.f32.mrb[0].mxu0
    %312 = vmatprep.mubr.f32.mxu0 0.0
    %313 = vmatmul.mubr.f32.gmra.mrb[0].mxu0 %v169
    %v314 = vpop.f32.mrb[0].mxu0
    %v315 = vadd.f32 0.0, %v314
    %v316 = vpop.f32.mrb[0].mxu0
    %317 = vmatprep.mubr.f32.mxu0 0.0
    %318 = vmatmul.mubr.f32.gmra.mrb[0].mxu0 %v172
    %v319 = vpop.f32.mrb[0].mxu0
    %v320 = vadd.f32 0.0, %v319
    %v321 = vpop.f32.mrb[0].mxu0
    %322 = vdwg.mxu0
    %vm323 = vcmask 80896
    %v325 = vsel %vm323, %v93, 0
    %v328 = vsel %vm323, %v94, 0
    %v331 = vsel %vm323, %v95, 0
    %v334 = vsel %vm323, %v96, 0
    %v337 = vsel %vm323, %v97, 0
    %v340 = vsel %vm323, %v98, 0
    %v343 = vsel %vm323, %v99, 0
    %v346 = vsel %vm323, %v100, 0
    %v349 = vsel %vm323, %v101, 0
    %v352 = vsel %vm323, %v102, 0
    %v355 = vsel %vm323, %v103, 0
    %v358 = vsel %vm323, %v104, 0
    %v361 = vsel %vm323, %v105, 0
    %v364 = vsel %vm323, %v106, 0
    %v367 = vsel %vm323, %v107, 0
    %v370 = vsel %vm323, %v108, 0
    %vm372 = vcmask 1041408
    %v374 = vsel %vm372, %v90, 0
    %376 = vmatprep.subr.mxu0 0.0
    %377 = vmatpush1.msra.mxu0 %v89
    %378 = vmatprep.subr.mxu0 0.0
    %379 = vmatpush1.msra.mxu0 %v374
    %380 = vmatprep.subr.mxu0 0.0
    %381 = vmatpush1.msra.mxu0 0.0
    %382 = vmatprep.subr.mxu0 0.0
    %383 = vmatpush1.msra.mxu0 0.0
    %384 = vmatprep.subr.mxu0 0.0
    %385 = vmatpush1.msra.mxu0 0.0
    %386 = vmatprep.subr.mxu0 0.0
    %387 = vmatpush1.msra.mxu0 0.0
    %388 = vmatprep.subr.mxu0 0.0
    %389 = vmatpush1.msra.mxu0 0.0
    %390 = vmatprep.subr.mxu0 0.0
    %391 = vmatpush1.msra.mxu0 0.0
    %392 = vmatprep.subr.mxu0 0.0
    %393 = vmatpush1.msra.mxu0 0.0
    %394 = vmatprep.subr.mxu0 0.0
    %395 = vmatpush1.msra.mxu0 0.0
    %396 = vmatprep.subr.mxu0 0.0
    %397 = vmatpush1.msra.mxu0 0.0
    %398 = vmatprep.subr.mxu0 0.0
    %399 = vmatpush1.msra.mxu0 0.0
    %400 = vmatprep.subr.mxu0 0.0
    %401 = vmatpush1.msra.mxu0 0.0
    %402 = vmatprep.subr.mxu0 0.0
    %403 = vmatpush1.msra.mxu0 0.0
    %404 = vmatprep.subr.mxu0 0.0
    %405 = vmatpush1.msra.mxu0 0.0
    %406 = vmatprep.subr.mxu0 0.0
    %407 = vmatpush1.msra.mxu0 0.0
    %408 = vmatprep.subr.mxu0 0.0
    %409 = vmatpush1.msra.mxu0 0.0
    %410 = vmatprep.subr.mxu0 0.0
    %411 = vmatpush1.msra.mxu0 0.0
    %412 = vmatprep.subr.mxu0 0.0
    %413 = vmatpush1.msra.mxu0 0.0
    %414 = vmatprep.subr.mxu0 0.0
    %415 = vmatpush1.msra.mxu0 0.0
    %416 = vmatprep.subr.mxu0 0.0
    %417 = vmatpush1.msra.mxu0 0.0
    %418 = vmatprep.subr.mxu0 0.0
    %419 = vmatpush1.msra.mxu0 0.0
    %420 = vmatprep.subr.mxu0 0.0
    %421 = vmatpush1.msra.mxu0 0.0
    %422 = vmatprep.subr.mxu0 0.0
    %423 = vmatpush1.msra.mxu0 0.0
    %424 = vmatprep.subr.mxu0 0.0
    %425 = vmatpush1.msra.mxu0 0.0
    %426 = vmatprep.subr.mxu0 0.0
    %427 = vmatpush1.msra.mxu0 0.0
    %428 = vmatprep.subr.mxu0 0.0
    %429 = vmatpush1.msra.mxu0 0.0
    %430 = vmatprep.subr.mxu0 0.0
    %431 = vmatpush1.msra.mxu0 0.0
    %432 = vmatprep.subr.mxu0 0.0
    %433 = vmatpush1.msra.mxu0 0.0
    %434 = vmatprep.subr.mxu0 0.0
    %435 = vmatpush1.msra.mxu0 0.0
    %436 = vmatprep.subr.mxu0 0.0
    %437 = vmatpush1.msra.mxu0 0.0
    %438 = vmatprep.subr.mxu0 0.0
    %439 = vmatpush1.msra.mxu0 0.0
    %440 = vmatprep.mubr.f32.mxu0 0.0
    %441 = vmatmul.mubr.f32.gmra.mrb[0].mxu0 %v325
    %v442 = vpop.f32.mrb[0].mxu0
    %v443 = vadd.f32 %v245, %v442
    %v444 = vpop.f32.mrb[0].mxu0
    %445 = vmatprep.mubr.f32.mxu0 0.0
    %446 = vmatmul.mubr.f32.gmra.mrb[0].mxu0 %v328
    %v447 = vpop.f32.mrb[0].mxu0
    %v448 = vadd.f32 %v250, %v447
    %v449 = vpop.f32.mrb[0].mxu0
    %450 = vmatprep.mubr.f32.mxu0 0.0
    %451 = vmatmul.mubr.f32.gmra.mrb[0].mxu0 %v331
    %v452 = vpop.f32.mrb[0].mxu0
    %v453 = vadd.f32 %v255, %v452
    %v454 = vpop.f32.mrb[0].mxu0
    %455 = vmatprep.mubr.f32.mxu0 0.0
    %456 = vmatmul.mubr.f32.gmra.mrb[0].mxu0 %v334
    %v457 = vpop.f32.mrb[0].mxu0
    %v458 = vadd.f32 %v260, %v457
    %v459 = vpop.f32.mrb[0].mxu0
    %460 = vmatprep.mubr.f32.mxu0 0.0
    %461 = vmatmul.mubr.f32.gmra.mrb[0].mxu0 %v337
    %v462 = vpop.f32.mrb[0].mxu0
    %v463 = vadd.f32 %v265, %v462
    %v464 = vpop.f32.mrb[0].mxu0
    %465 = vmatprep.mubr.f32.mxu0 0.0
    %466 = vmatmul.mubr.f32.gmra.mrb[0].mxu0 %v340
    %v467 = vpop.f32.mrb[0].mxu0
    %v468 = vadd.f32 %v270, %v467
    %v469 = vpop.f32.mrb[0].mxu0
    %470 = vmatprep.mubr.f32.mxu0 0.0
    %471 = vmatmul.mubr.f32.gmra.mrb[0].mxu0 %v343
    %v472 = vpop.f32.mrb[0].mxu0
    %v473 = vadd.f32 %v275, %v472
    %v474 = vpop.f32.mrb[0].mxu0
    %475 = vmatprep.mubr.f32.mxu0 0.0
    %476 = vmatmul.mubr.f32.gmra.mrb[0].mxu0 %v346
    %v477 = vpop.f32.mrb[0].mxu0
    %v478 = vadd.f32 %v280, %v477
    %v479 = vpop.f32.mrb[0].mxu0
    %480 = vmatprep.mubr.f32.mxu0 0.0
    %481 = vmatmul.mubr.f32.gmra.mrb[0].mxu0 %v349
    %v482 = vpop.f32.mrb[0].mxu0
    %v483 = vadd.f32 %v285, %v482
    %v484 = vpop.f32.mrb[0].mxu0
    %485 = vmatprep.mubr.f32.mxu0 0.0
    %486 = vmatmul.mubr.f32.gmra.mrb[0].mxu0 %v352
    %v487 = vpop.f32.mrb[0].mxu0
    %v488 = vadd.f32 %v290, %v487
    %v489 = vpop.f32.mrb[0].mxu0
    %490 = vmatprep.mubr.f32.mxu0 0.0
    %491 = vmatmul.mubr.f32.gmra.mrb[0].mxu0 %v355
    %v492 = vpop.f32.mrb[0].mxu0
    %v493 = vadd.f32 %v295, %v492
    %v494 = vpop.f32.mrb[0].mxu0
    %495 = vmatprep.mubr.f32.mxu0 0.0
    %496 = vmatmul.mubr.f32.gmra.mrb[0].mxu0 %v358
    %v497 = vpop.f32.mrb[0].mxu0
    %v498 = vadd.f32 %v300, %v497
    %v499 = vpop.f32.mrb[0].mxu0
    %500 = vmatprep.mubr.f32.mxu0 0.0
    %501 = vmatmul.mubr.f32.gmra.mrb[0].mxu0 %v361
    %v502 = vpop.f32.mrb[0].mxu0
    %v503 = vadd.f32 %v305, %v502
    %v504 = vpop.f32.mrb[0].mxu0
    %505 = vmatprep.mubr.f32.mxu0 0.0
    %506 = vmatmul.mubr.f32.gmra.mrb[0].mxu0 %v364
    %v507 = vpop.f32.mrb[0].mxu0
    %v508 = vadd.f32 %v310, %v507
    %v509 = vpop.f32.mrb[0].mxu0
    %510 = vmatprep.mubr.f32.mxu0 0.0
    %511 = vmatmul.mubr.f32.gmra.mrb[0].mxu0 %v367
    %v512 = vpop.f32.mrb[0].mxu0
    %v513 = vadd.f32 %v315, %v512
    %v514 = vpop.f32.mrb[0].mxu0
    %515 = vmatprep.mubr.f32.mxu0 0.0
    %516 = vmatmul.mubr.f32.gmra.mrb[0].mxu0 %v370
    %v517 = vpop.f32.mrb[0].mxu0
    %v518 = vadd.f32 %v320, %v517
    %v519 = vpop.f32.mrb[0].mxu0
    %520 = vdwg.mxu0
    %v521 = vlaneseq
    %v522 = vshrl.u32 %v521, 7
    %v523 = vsub.s32 0, %v522
    %v524 = vrot.slane %v92, %v523
    %v525 = vadd.f32 %v443, %v524
    %v526 = vadd.f32 %v448, %v524
    %v527 = vadd.f32 %v453, %v524
    %v528 = vadd.f32 %v458, %v524
    %v529 = vadd.f32 %v463, %v524
    %v530 = vadd.f32 %v468, %v524
    %v531 = vadd.f32 %v473, %v524
    %v532 = vadd.f32 %v478, %v524
    %v533 = vadd.f32 %v483, %v524
    %v534 = vadd.f32 %v488, %v524
    %v535 = vadd.f32 %v493, %v524
    %v536 = vadd.f32 %v498, %v524
    %v537 = vadd.f32 %v503, %v524
    %v538 = vadd.f32 %v508, %v524
    %v539 = vadd.f32 %v513, %v524
    %v540 = vadd.f32 %v518, %v524
    %v541 = vmax.f32 %v525, 0.0
    %v542 = vmax.f32 %v526, 0.0
    %v543 = vmax.f32 %v527, 0.0
    %v544 = vmax.f32 %v528, 0.0
    %v545 = vmax.f32 %v529, 0.0
    %v546 = vmax.f32 %v530, 0.0
    %v547 = vmax.f32 %v531, 0.0
    %v548 = vmax.f32 %v532, 0.0
    %v549 = vmax.f32 %v533, 0.0
    %v550 = vmax.f32 %v534, 0.0
    %v551 = vmax.f32 %v535, 0.0
    %v552 = vmax.f32 %v536, 0.0
    %v553 = vmax.f32 %v537, 0.0
    %v554 = vmax.f32 %v538, 0.0
    %v555 = vmax.f32 %v539, 0.0
    %v556 = vmax.f32 %v540, 0.0
    %v557 = vld [vmem:[#allocation3 + $0x20] sm:$0xff]
    %v558 = vld [vmem:[#allocation3 + $0x28] sm:$0xff]
    %v559 = vld [vmem:[#allocation3 + $0x30] sm:$0xff]
    %v560 = vld [vmem:[#allocation3 + $0x38] sm:$0xff]
    %v561 = vld [vmem:[#allocation3 + $0x40] sm:$0xff]
    %v562 = vld [vmem:[#allocation3 + $0x48] sm:$0xff]
    %v563 = vld [vmem:[#allocation3 + $0x50] sm:$0xff]
    %v564 = vld [vmem:[#allocation3 + $0x58] sm:$0xff]
    %v565 = vld [vmem:[#allocation3 + $0x60] sm:$0xff]
    %v566 = vld [vmem:[#allocation3 + $0x68] sm:$0xff]
    %v567 = vld [vmem:[#allocation3 + $0x70] sm:$0xff]
    %v568 = vld [vmem:[#allocation3 + $0x78] sm:$0xff]
    %v569 = vld [vmem:[#allocation3 + $0x80] sm:$0xff]
    %v570 = vld [vmem:[#allocation3 + $0x88] sm:$0xff]
    %v571 = vld [vmem:[#allocation3 + $0x90] sm:$0xff]
    %v572 = vld [vmem:[#allocation3 + $0x98] sm:$0xff]
    %v573 = vld [vmem:[#allocation3 + $0xa0] sm:$0x1]
    %v574 = vlaneseq
    %v575 = vshrl.u32 %v574, 7
    %v576 = vsub.s32 0, %v575
    %v577 = vrot.slane %v573, %v576
    %578 = vmatprep.subr.mxu0 0.0
    %579 = vmatpush1.msra.mxu0 %v557
    %580 = vmatprep.subr.mxu0 0.0
    %581 = vmatpush1.msra.mxu0 %v558
    %582 = vmatprep.subr.mxu0 0.0
    %583 = vmatpush1.msra.mxu0 %v559
    %584 = vmatprep.subr.mxu0 0.0
    %585 = vmatpush1.msra.mxu0 %v560
    %586 = vmatprep.subr.mxu0 0.0
    %587 = vmatpush1.msra.mxu0 %v561
    %588 = vmatprep.subr.mxu0 0.0
    %589 = vmatpush1.msra.mxu0 %v562
    %590 = vmatprep.subr.mxu0 0.0
    %591 = vmatpush1.msra.mxu0 %v563
    %592 = vmatprep.subr.mxu0 0.0
    %593 = vmatpush1.msra.mxu0 %v564
    %594 = vmatprep.subr.mxu0 0.0
    %595 = vmatpush1.msra.mxu0 %v565
    %596 = vmatprep.subr.mxu0 0.0
    %597 = vmatpush1.msra.mxu0 %v566
    %598 = vmatprep.subr.mxu0 0.0
    %599 = vmatpush1.msra.mxu0 %v567
    %600 = vmatprep.subr.mxu0 0.0
    %601 = vmatpush1.msra.mxu0 %v568
    %602 = vmatprep.subr.mxu0 0.0
    %603 = vmatpush1.msra.mxu0 %v569
    %604 = vmatprep.subr.mxu0 0.0
    %605 = vmatpush1.msra.mxu0 %v570
    %606 = vmatprep.subr.mxu0 0.0
    %607 = vmatpush1.msra.mxu0 %v571
    %608 = vmatprep.subr.mxu0 0.0
    %609 = vmatpush1.msra.mxu0 %v572
    %610 = vmatprep.subr.mxu0 0.0
    %611 = vmatpush1.msra.mxu0 0.0
    %612 = vmatprep.subr.mxu0 0.0
    %613 = vmatpush1.msra.mxu0 0.0
    %614 = vmatprep.subr.mxu0 0.0
    %615 = vmatpush1.msra.mxu0 0.0
    %616 = vmatprep.subr.mxu0 0.0
    %617 = vmatpush1.msra.mxu0 0.0
    %618 = vmatprep.subr.mxu0 0.0
    %619 = vmatpush1.msra.mxu0 0.0
    %620 = vmatprep.subr.mxu0 0.0
    %621 = vmatpush1.msra.mxu0 0.0
    %622 = vmatprep.subr.mxu0 0.0
    %623 = vmatpush1.msra.mxu0 0.0
    %624 = vmatprep.subr.mxu0 0.0
    %625 = vmatpush1.msra.mxu0 0.0
    %626 = vmatprep.subr.mxu0 0.0
    %627 = vmatpush1.msra.mxu0 0.0
    %628 = vmatprep.subr.mxu0 0.0
    %629 = vmatpush1.msra.mxu0 0.0
    %630 = vmatprep.subr.mxu0 0.0
    %631 = vmatpush1.msra.mxu0 0.0
    %632 = vmatprep.subr.mxu0 0.0
    %633 = vmatpush1.msra.mxu0 0.0
    %634 = vmatprep.subr.mxu0 0.0
    %635 = vmatpush1.msra.mxu0 0.0
    %636 = vmatprep.subr.mxu0 0.0
    %637 = vmatpush1.msra.mxu0 0.0
    %638 = vmatprep.subr.mxu0 0.0
    %639 = vmatpush1.msra.mxu0 0.0
    %640 = vmatprep.subr.mxu0 0.0
    %641 = vmatpush1.msra.mxu0 0.0
    %642 = vmatprep.mubr.f32.mxu0 0.0
    %643 = vmatmul.mubr.f32.gmra.mrb[0].mxu0 %v541
    %v644 = vpop.f32.mrb[0].mxu0
    %v645 = vadd.f32 %v577, %v644
    %v646 = vpop.f32.mrb[0].mxu0
    %647 = vmatprep.mubr.f32.mxu0 0.0
    %648 = vmatmul.mubr.f32.gmra.mrb[0].mxu0 %v542
    %v649 = vpop.f32.mrb[0].mxu0
    %v650 = vadd.f32 %v577, %v649
    %v651 = vpop.f32.mrb[0].mxu0
    %652 = vmatprep.mubr.f32.mxu0 0.0
    %653 = vmatmul.mubr.f32.gmra.mrb[0].mxu0 %v543
    %v654 = vpop.f32.mrb[0].mxu0
    %v655 = vadd.f32 %v577, %v654
    %v656 = vpop.f32.mrb[0].mxu0
    %657 = vmatprep.mubr.f32.mxu0 0.0
    %658 = vmatmul.mubr.f32.gmra.mrb[0].mxu0 %v544
    %v659 = vpop.f32.mrb[0].mxu0
    %v660 = vadd.f32 %v577, %v659
    %v661 = vpop.f32.mrb[0].mxu0
    %662 = vmatprep.mubr.f32.mxu0 0.0
    %663 = vmatmul.mubr.f32.gmra.mrb[0].mxu0 %v545
    %v664 = vpop.f32.mrb[0].mxu0
    %v665 = vadd.f32 %v577, %v664
    %v666 = vpop.f32.mrb[0].mxu0
    %667 = vmatprep.mubr.f32.mxu0 0.0
    %668 = vmatmul.mubr.f32.gmra.mrb[0].mxu0 %v546
    %v669 = vpop.f32.mrb[0].mxu0
    %v670 = vadd.f32 %v577, %v669
    %v671 = vpop.f32.mrb[0].mxu0
    %672 = vmatprep.mubr.f32.mxu0 0.0
    %673 = vmatmul.mubr.f32.gmra.mrb[0].mxu0 %v547
    %v674 = vpop.f32.mrb[0].mxu0
    %v675 = vadd.f32 %v577, %v674
    %v676 = vpop.f32.mrb[0].mxu0
    %677 = vmatprep.mubr.f32.mxu0 0.0
    %678 = vmatmul.mubr.f32.gmra.mrb[0].mxu0 %v548
    %v679 = vpop.f32.mrb[0].mxu0
    %v680 = vadd.f32 %v577, %v679
    %v681 = vpop.f32.mrb[0].mxu0
    %682 = vmatprep.mubr.f32.mxu0 0.0
    %683 = vmatmul.mubr.f32.gmra.mrb[0].mxu0 %v549
    %v684 = vpop.f32.mrb[0].mxu0
    %v685 = vadd.f32 %v577, %v684
    %v686 = vpop.f32.mrb[0].mxu0
    %687 = vmatprep.mubr.f32.mxu0 0.0
    %688 = vmatmul.mubr.f32.gmra.mrb[0].mxu0 %v550
    %v689 = vpop.f32.mrb[0].mxu0
    %v690 = vadd.f32 %v577, %v689
    %v691 = vpop.f32.mrb[0].mxu0
    %692 = vmatprep.mubr.f32.mxu0 0.0
    %693 = vmatmul.mubr.f32.gmra.mrb[0].mxu0 %v551
    %v694 = vpop.f32.mrb[0].mxu0
    %v695 = vadd.f32 %v577, %v694
    %v696 = vpop.f32.mrb[0].mxu0
    %697 = vmatprep.mubr.f32.mxu0 0.0
    %698 = vmatmul.mubr.f32.gmra.mrb[0].mxu0 %v552
    %v699 = vpop.f32.mrb[0].mxu0
    %v700 = vadd.f32 %v577, %v699
    %v701 = vpop.f32.mrb[0].mxu0
    %702 = vmatprep.mubr.f32.mxu0 0.0
    %703 = vmatmul.mubr.f32.gmra.mrb[0].mxu0 %v553
    %v704 = vpop.f32.mrb[0].mxu0
    %v705 = vadd.f32 %v577, %v704
    %v706 = vpop.f32.mrb[0].mxu0
    %707 = vmatprep.mubr.f32.mxu0 0.0
    %708 = vmatmul.mubr.f32.gmra.mrb[0].mxu0 %v554
    %v709 = vpop.f32.mrb[0].mxu0
    %v710 = vadd.f32 %v577, %v709
    %v711 = vpop.f32.mrb[0].mxu0
    %712 = vmatprep.mubr.f32.mxu0 0.0
    %713 = vmatmul.mubr.f32.gmra.mrb[0].mxu0 %v555
    %v714 = vpop.f32.mrb[0].mxu0
    %v715 = vadd.f32 %v577, %v714
    %v716 = vpop.f32.mrb[0].mxu0
    %717 = vmatprep.mubr.f32.mxu0 0.0
    %718 = vmatmul.mubr.f32.gmra.mrb[0].mxu0 %v556
    %v719 = vpop.f32.mrb[0].mxu0
    %v720 = vadd.f32 %v577, %v719
    %v721 = vpop.f32.mrb[0].mxu0
    %722 = vdwg.mxu0
    %v723 = vmax.f32 %v645, 0.0
    %v724 = vmax.f32 %v650, 0.0
    %v725 = vmax.f32 %v655, 0.0
    %v726 = vmax.f32 %v660, 0.0
    %v727 = vmax.f32 %v665, 0.0
    %v728 = vmax.f32 %v670, 0.0
    %v729 = vmax.f32 %v675, 0.0
    %v730 = vmax.f32 %v680, 0.0
    %v731 = vmax.f32 %v685, 0.0
    %v732 = vmax.f32 %v690, 0.0
    %v733 = vmax.f32 %v695, 0.0
    %v734 = vmax.f32 %v700, 0.0
    %v735 = vmax.f32 %v705, 0.0
    %v736 = vmax.f32 %v710, 0.0
    %v737 = vmax.f32 %v715, 0.0
    %v738 = vmax.f32 %v720, 0.0
    %v739 = vld [vmem:[#allocation3 + $0xa8] sm:$0xff]
    %v740 = vld [vmem:[#allocation3 + $0xb0] sm:$0xff]
    %v741 = vld [vmem:[#allocation3 + $0xb8] sm:$0xff]
    %v742 = vld [vmem:[#allocation3 + $0xc0] sm:$0xff]
    %v743 = vld [vmem:[#allocation3 + $0xc8] sm:$0xff]
    %v744 = vld [vmem:[#allocation3 + $0xd0] sm:$0xff]
    %v745 = vld [vmem:[#allocation3 + $0xd8] sm:$0xff]
    %v746 = vld [vmem:[#allocation3 + $0xe0] sm:$0xff]
    %v747 = vld [vmem:[#allocation3 + $0xe8] sm:$0xff]
    %v748 = vld [vmem:[#allocation3 + $0xf0] sm:$0xff]
    %v749 = vld [vmem:[#allocation3 + $0xf8] sm:$0xff]
    %v750 = vld [vmem:[#allocation3 + $0x100] sm:$0xff]
    %v751 = vld [vmem:[#allocation3 + $0x108] sm:$0xff]
    %v752 = vld [vmem:[#allocation3 + $0x110] sm:$0xff]
    %v753 = vld [vmem:[#allocation3 + $0x118] sm:$0xff]
    %v754 = vld [vmem:[#allocation3 + $0x120] sm:$0xff]
    %v755 = vld [vmem:[#allocation3 + $0x128] sm:$0x1]
    %v756 = vlaneseq
    %v757 = vshrl.u32 %v756, 7
    %v758 = vsub.s32 0, %v757
    %v759 = vrot.slane %v755, %v758
    %760 = vmatprep.subr.mxu0 0.0
    %761 = vmatpush1.msra.mxu0 %v739
    %762 = vmatprep.subr.mxu0 0.0
    %763 = vmatpush1.msra.mxu0 %v740
    %764 = vmatprep.subr.mxu0 0.0
    %765 = vmatpush1.msra.mxu0 %v741
    %766 = vmatprep.subr.mxu0 0.0
    %767 = vmatpush1.msra.mxu0 %v742
    %768 = vmatprep.subr.mxu0 0.0
    %769 = vmatpush1.msra.mxu0 %v743
    %770 = vmatprep.subr.mxu0 0.0
    %771 = vmatpush1.msra.mxu0 %v744
    %772 = vmatprep.subr.mxu0 0.0
    %773 = vmatpush1.msra.mxu0 %v745
    %774 = vmatprep.subr.mxu0 0.0
    %775 = vmatpush1.msra.mxu0 %v746
    %776 = vmatprep.subr.mxu0 0.0
    %777 = vmatpush1.msra.mxu0 %v747
    %778 = vmatprep.subr.mxu0 0.0
    %779 = vmatpush1.msra.mxu0 %v748
    %780 = vmatprep.subr.mxu0 0.0
    %781 = vmatpush1.msra.mxu0 %v749
    %782 = vmatprep.subr.mxu0 0.0
    %783 = vmatpush1.msra.mxu0 %v750
    %784 = vmatprep.subr.mxu0 0.0
    %785 = vmatpush1.msra.mxu0 %v751
    %786 = vmatprep.subr.mxu0 0.0
    %787 = vmatpush1.msra.mxu0 %v752
    %788 = vmatprep.subr.mxu0 0.0
    %789 = vmatpush1.msra.mxu0 %v753
    %790 = vmatprep.subr.mxu0 0.0
    %791 = vmatpush1.msra.mxu0 %v754
    %792 = vmatprep.subr.mxu0 0.0
    %793 = vmatpush1.msra.mxu0 0.0
    %794 = vmatprep.subr.mxu0 0.0
    %795 = vmatpush1.msra.mxu0 0.0
    %796 = vmatprep.subr.mxu0 0.0
    %797 = vmatpush1.msra.mxu0 0.0
    %798 = vmatprep.subr.mxu0 0.0
    %799 = vmatpush1.msra.mxu0 0.0
    %800 = vmatprep.subr.mxu0 0.0
    %801 = vmatpush1.msra.mxu0 0.0
    %802 = vmatprep.subr.mxu0 0.0
    %803 = vmatpush1.msra.mxu0 0.0
    %804 = vmatprep.subr.mxu0 0.0
    %805 = vmatpush1.msra.mxu0 0.0
    %806 = vmatprep.subr.mxu0 0.0
    %807 = vmatpush1.msra.mxu0 0.0
    %808 = vmatprep.subr.mxu0 0.0
    %809 = vmatpush1.msra.mxu0 0.0
    %810 = vmatprep.subr.mxu0 0.0
    %811 = vmatpush1.msra.mxu0 0.0
    %812 = vmatprep.subr.mxu0 0.0
    %813 = vmatpush1.msra.mxu0 0.0
    %814 = vmatprep.subr.mxu0 0.0
    %815 = vmatpush1.msra.mxu0 0.0
    %816 = vmatprep.subr.mxu0 0.0
    %817 = vmatpush1.msra.mxu0 0.0
    %818 = vmatprep.subr.mxu0 0.0
    %819 = vmatpush1.msra.mxu0 0.0
    %820 = vmatprep.subr.mxu0 0.0
    %821 = vmatpush1.msra.mxu0 0.0
    %822 = vmatprep.subr.mxu0 0.0
    %823 = vmatpush1.msra.mxu0 0.0
    %824 = vmatprep.mubr.f32.mxu0 0.0
    %825 = vmatmul.mubr.f32.gmra.mrb[0].mxu0 %v723
    %v826 = vpop.f32.mrb[0].mxu0
    %v827 = vadd.f32 %v759, %v826
    %v828 = vpop.f32.mrb[0].mxu0
    %829 = vmatprep.mubr.f32.mxu0 0.0
    %830 = vmatmul.mubr.f32.gmra.mrb[0].mxu0 %v724
    %v831 = vpop.f32.mrb[0].mxu0
    %v832 = vadd.f32 %v759, %v831
    %v833 = vpop.f32.mrb[0].mxu0
    %834 = vmatprep.mubr.f32.mxu0 0.0
    %835 = vmatmul.mubr.f32.gmra.mrb[0].mxu0 %v725
    %v836 = vpop.f32.mrb[0].mxu0
    %v837 = vadd.f32 %v759, %v836
    %v838 = vpop.f32.mrb[0].mxu0
    %839 = vmatprep.mubr.f32.mxu0 0.0
    %840 = vmatmul.mubr.f32.gmra.mrb[0].mxu0 %v726
    %v841 = vpop.f32.mrb[0].mxu0
    %v842 = vadd.f32 %v759, %v841
    %v843 = vpop.f32.mrb[0].mxu0
    %844 = vmatprep.mubr.f32.mxu0 0.0
    %845 = vmatmul.mubr.f32.gmra.mrb[0].mxu0 %v727
    %v846 = vpop.f32.mrb[0].mxu0
    %v847 = vadd.f32 %v759, %v846
    %v848 = vpop.f32.mrb[0].mxu0
    %849 = vmatprep.mubr.f32.mxu0 0.0
    %850 = vmatmul.mubr.f32.gmra.mrb[0].mxu0 %v728
    %v851 = vpop.f32.mrb[0].mxu0
    %v852 = vadd.f32 %v759, %v851
    %v853 = vpop.f32.mrb[0].mxu0
    %854 = vmatprep.mubr.f32.mxu0 0.0
    %855 = vmatmul.mubr.f32.gmra.mrb[0].mxu0 %v729
    %v856 = vpop.f32.mrb[0].mxu0
    %v857 = vadd.f32 %v759, %v856
    %v858 = vpop.f32.mrb[0].mxu0
    %859 = vmatprep.mubr.f32.mxu0 0.0
    %860 = vmatmul.mubr.f32.gmra.mrb[0].mxu0 %v730
    %v861 = vpop.f32.mrb[0].mxu0
    %v862 = vadd.f32 %v759, %v861
    %v863 = vpop.f32.mrb[0].mxu0
    %864 = vmatprep.mubr.f32.mxu0 0.0
    %865 = vmatmul.mubr.f32.gmra.mrb[0].mxu0 %v731
    %v866 = vpop.f32.mrb[0].mxu0
    %v867 = vadd.f32 %v759, %v866
    %v868 = vpop.f32.mrb[0].mxu0
    %869 = vmatprep.mubr.f32.mxu0 0.0
    %870 = vmatmul.mubr.f32.gmra.mrb[0].mxu0 %v732
    %v871 = vpop.f32.mrb[0].mxu0
    %v872 = vadd.f32 %v759, %v871
    %v873 = vpop.f32.mrb[0].mxu0
    %874 = vmatprep.mubr.f32.mxu0 0.0
    %875 = vmatmul.mubr.f32.gmra.mrb[0].mxu0 %v733
    %v876 = vpop.f32.mrb[0].mxu0
    %v877 = vadd.f32 %v759, %v876
    %v878 = vpop.f32.mrb[0].mxu0
    %879 = vmatprep.mubr.f32.mxu0 0.0
    %880 = vmatmul.mubr.f32.gmra.mrb[0].mxu0 %v734
    %v881 = vpop.f32.mrb[0].mxu0
    %v882 = vadd.f32 %v759, %v881
    %v883 = vpop.f32.mrb[0].mxu0
    %884 = vmatprep.mubr.f32.mxu0 0.0
    %885 = vmatmul.mubr.f32.gmra.mrb[0].mxu0 %v735
    %v886 = vpop.f32.mrb[0].mxu0
    %v887 = vadd.f32 %v759, %v886
    %v888 = vpop.f32.mrb[0].mxu0
    %889 = vmatprep.mubr.f32.mxu0 0.0
    %890 = vmatmul.mubr.f32.gmra.mrb[0].mxu0 %v736
    %v891 = vpop.f32.mrb[0].mxu0
    %v892 = vadd.f32 %v759, %v891
    %v893 = vpop.f32.mrb[0].mxu0
    %894 = vmatprep.mubr.f32.mxu0 0.0
    %895 = vmatmul.mubr.f32.gmra.mrb[0].mxu0 %v737
    %v896 = vpop.f32.mrb[0].mxu0
    %v897 = vadd.f32 %v759, %v896
    %v898 = vpop.f32.mrb[0].mxu0
    %899 = vmatprep.mubr.f32.mxu0 0.0
    %900 = vmatmul.mubr.f32.gmra.mrb[0].mxu0 %v738
    %v901 = vpop.f32.mrb[0].mxu0
    %v902 = vadd.f32 %v759, %v901
    %v903 = vpop.f32.mrb[0].mxu0
    %904 = vdwg.mxu0
    %921 = vrot.lane.b32.xlu0 %v827, 64
    %v922 = vpop.permute.xlu0 %921
    %923 = vrot.lane.b32.xlu0 %v832, 64
    %v924 = vpop.permute.xlu0 %923
    %925 = vrot.lane.b32.xlu0 %v837, 64
    %v926 = vpop.permute.xlu0 %925
    %927 = vrot.lane.b32.xlu0 %v842, 64
    %v928 = vpop.permute.xlu0 %927
    %929 = vrot.lane.b32.xlu0 %v847, 64
    %v930 = vpop.permute.xlu0 %929
    %931 = vrot.lane.b32.xlu0 %v852, 64
    %v932 = vpop.permute.xlu0 %931
    %933 = vrot.lane.b32.xlu0 %v857, 64
    %v934 = vpop.permute.xlu0 %933
    %935 = vrot.lane.b32.xlu0 %v862, 64
    %v936 = vpop.permute.xlu0 %935
    %937 = vrot.lane.b32.xlu0 %v867, 64
    %v938 = vpop.permute.xlu0 %937
    %939 = vrot.lane.b32.xlu0 %v872, 64
    %v940 = vpop.permute.xlu0 %939
    %941 = vrot.lane.b32.xlu0 %v877, 64
    %v942 = vpop.permute.xlu0 %941
    %943 = vrot.lane.b32.xlu0 %v882, 64
    %v944 = vpop.permute.xlu0 %943
    %945 = vrot.lane.b32.xlu0 %v887, 64
    %v946 = vpop.permute.xlu0 %945
    %947 = vrot.lane.b32.xlu0 %v892, 64
    %v948 = vpop.permute.xlu0 %947
    %949 = vrot.lane.b32.xlu0 %v897, 64
    %v950 = vpop.permute.xlu0 %949
    %951 = vrot.lane.b32.xlu0 %v902, 64
    %v952 = vpop.permute.xlu0 %951
    %vm969 = vcmask 261120
    %970 = vst.msk [vmem:[%s86] sm:$0xff] %vm969, %v922
    %971 = vst.msk [vmem:[%s86 + $0x8] sm:$0xff] %vm969, %v924
    %972 = vst.msk [vmem:[%s86 + $0x10] sm:$0xff] %vm969, %v926
    %973 = vst.msk [vmem:[%s86 + $0x18] sm:$0xff] %vm969, %v928
    %974 = vst.msk [vmem:[%s86 + $0x20] sm:$0xff] %vm969, %v930
    %975 = vst.msk [vmem:[%s86 + $0x28] sm:$0xff] %vm969, %v932
    %976 = vst.msk [vmem:[%s86 + $0x30] sm:$0xff] %vm969, %v934
    %977 = vst.msk [vmem:[%s86 + $0x38] sm:$0xff] %vm969, %v936
    %978 = vst.msk [vmem:[%s86 + $0x40] sm:$0xff] %vm969, %v938
    %979 = vst.msk [vmem:[%s86 + $0x48] sm:$0xff] %vm969, %v940
    %980 = vst.msk [vmem:[%s86 + $0x50] sm:$0xff] %vm969, %v942
    %981 = vst.msk [vmem:[%s86 + $0x58] sm:$0xff] %vm969, %v944
    %982 = vst.msk [vmem:[%s86 + $0x60] sm:$0xff] %vm969, %v946
    %983 = vst.msk [vmem:[%s86 + $0x68] sm:$0xff] %vm969, %v948
    %984 = vst.msk [vmem:[%s86 + $0x70] sm:$0xff] %vm969, %v950
    %985 = vst.msk [vmem:[%s86 + $0x78] sm:$0xff] %vm969, %v952
    %p986 = scmp.eq.s32.totalorder 0, 0
    // Predicated region
    $region18: #{tpu_custom_call.1} parent=1 // pred_check
      %p987 = pneg %p986
    $region19: #{tpu_custom_call.1} parent=1 // pred_check_branch
      %989 = sbr.rel (%p987) target = $region21
    $region20: #{tpu_custom_call.1} parent=1 // pred_region
      %990 = vst.msk [vmem:[#allocation2] sm:$0xff] %vm969, 0.0
      %991 = vst.msk [vmem:[#allocation2 + $0x8] sm:$0xff] %vm969, 0.0
      %992 = vst.msk [vmem:[#allocation2 + $0x10] sm:$0xff] %vm969, 0.0
      %993 = vst.msk [vmem:[#allocation2 + $0x18] sm:$0xff] %vm969, 0.0
    $region21: #{tpu_custom_call.1} parent=1 // pred_fallthru
      _
    %v994 = vld [vmem:[#allocation2] sm:$0xff]
    %v995 = vld [vmem:[#allocation2 + $0x8] sm:$0xff]
    %v996 = vld [vmem:[#allocation2 + $0x10] sm:$0xff]
    %v997 = vld [vmem:[#allocation2 + $0x18] sm:$0xff]
    %998 = vxpose.xlu0.b32.start [1/16] %v827, 128
    %999 = vxpose.xlu0.b32.cont [2/16] %v832, 128
    %1000 = vxpose.xlu0.b32.cont [3/16] %v837, 128
    %1001 = vxpose.xlu0.b32.cont [4/16] %v842, 128
    %1002 = vxpose.xlu0.b32.cont [5/16] %v847, 128
    %1003 = vxpose.xlu0.b32.cont [6/16] %v852, 128
    %1004 = vxpose.xlu0.b32.cont [7/16] %v857, 128
    %1005 = vxpose.xlu0.b32.cont [8/16] %v862, 128
    %1006 = vxpose.xlu0.b32.cont [9/16] %v867, 128
    %1007 = vxpose.xlu0.b32.cont [10/16] %v872, 128
    %1008 = vxpose.xlu0.b32.cont [11/16] %v877, 128
    %1009 = vxpose.xlu0.b32.cont [12/16] %v882, 128
    %1010 = vxpose.xlu0.b32.cont [13/16] %v887, 128
    %1011 = vxpose.xlu0.b32.cont [14/16] %v892, 128
    %1012 = vxpose.xlu0.b32.cont [15/16] %v897, 128
    %1013 = vxpose.xlu0.b32.end [16/16] %v902, 128
    %v1014 = vpop.trf.xlu0
    %v1015 = vpop.trf.xlu0
    %v1016 = vpop.trf.xlu0
    %v1017 = vpop.trf.xlu0
    %v1018 = vpop.trf.xlu0
    %v1019 = vpop.trf.xlu0
    %v1020 = vpop.trf.xlu0
    %v1021 = vpop.trf.xlu0
    %v1022 = vpop.trf.xlu0
    %v1023 = vpop.trf.xlu0
    %v1024 = vpop.trf.xlu0
    %v1025 = vpop.trf.xlu0
    %v1026 = vpop.trf.xlu0
    %v1027 = vpop.trf.xlu0
    %v1028 = vpop.trf.xlu0
    %v1029 = vpop.trf.xlu0
    %1030 = vrot.lane.b32.xlu0 %v827, 96
    %v1031 = vpop.permute.xlu0 %1030
    %1032 = vrot.lane.b32.xlu0 %v832, 96
    %v1033 = vpop.permute.xlu0 %1032
    %1034 = vrot.lane.b32.xlu0 %v837, 96
    %v1035 = vpop.permute.xlu0 %1034
    %1036 = vrot.lane.b32.xlu0 %v842, 96
    %v1037 = vpop.permute.xlu0 %1036
    %1038 = vrot.lane.b32.xlu0 %v847, 96
    %v1039 = vpop.permute.xlu0 %1038
    %1040 = vrot.lane.b32.xlu0 %v852, 96
    %v1041 = vpop.permute.xlu0 %1040
    %1042 = vrot.lane.b32.xlu0 %v857, 96
    %v1043 = vpop.permute.xlu0 %1042
    %1044 = vrot.lane.b32.xlu0 %v862, 96
    %v1045 = vpop.permute.xlu0 %1044
    %1046 = vrot.lane.b32.xlu0 %v867, 96
    %v1047 = vpop.permute.xlu0 %1046
    %1048 = vrot.lane.b32.xlu0 %v872, 96
    %v1049 = vpop.permute.xlu0 %1048
    %1050 = vrot.lane.b32.xlu0 %v877, 96
    %v1051 = vpop.permute.xlu0 %1050
    %1052 = vrot.lane.b32.xlu0 %v882, 96
    %v1053 = vpop.permute.xlu0 %1052
    %1054 = vrot.lane.b32.xlu0 %v887, 96
    %v1055 = vpop.permute.xlu0 %1054
    %1056 = vrot.lane.b32.xlu0 %v892, 96
    %v1057 = vpop.permute.xlu0 %1056
    %1058 = vrot.lane.b32.xlu0 %v897, 96
    %v1059 = vpop.permute.xlu0 %1058
    %1060 = vrot.lane.b32.xlu0 %v902, 96
    %v1061 = vpop.permute.xlu0 %1060
    %1078 = vmatprep.subr.mxu0 0.0
    %1079 = vmatpush1.msra.mxu0 %v1031
    %1080 = vmatprep.subr.mxu0 0.0
    %1081 = vmatpush1.msra.mxu0 %v1033
    %1082 = vmatprep.subr.mxu0 0.0
    %1083 = vmatpush1.msra.mxu0 %v1035
    %1084 = vmatprep.subr.mxu0 0.0
    %1085 = vmatpush1.msra.mxu0 %v1037
    %1086 = vmatprep.subr.mxu0 0.0
    %1087 = vmatpush1.msra.mxu0 %v1039
    %1088 = vmatprep.subr.mxu0 0.0
    %1089 = vmatpush1.msra.mxu0 %v1041
    %1090 = vmatprep.subr.mxu0 0.0
    %1091 = vmatpush1.msra.mxu0 %v1043
    %1092 = vmatprep.subr.mxu0 0.0
    %1093 = vmatpush1.msra.mxu0 %v1045
    %1094 = vmatprep.subr.mxu0 0.0
    %1095 = vmatpush1.msra.mxu0 %v1047
    %1096 = vmatprep.subr.mxu0 0.0
    %1097 = vmatpush1.msra.mxu0 %v1049
    %1098 = vmatprep.subr.mxu0 0.0
    %1099 = vmatpush1.msra.mxu0 %v1051
    %1100 = vmatprep.subr.mxu0 0.0
    %1101 = vmatpush1.msra.mxu0 %v1053
    %1102 = vmatprep.subr.mxu0 0.0
    %1103 = vmatpush1.msra.mxu0 %v1055
    %1104 = vmatprep.subr.mxu0 0.0
    %1105 = vmatpush1.msra.mxu0 %v1057
    %1106 = vmatprep.subr.mxu0 0.0
    %1107 = vmatpush1.msra.mxu0 %v1059
    %1108 = vmatprep.subr.mxu0 0.0
    %1109 = vmatpush1.msra.mxu0 %v1061
    %1110 = vmatprep.subr.mxu0 0.0
    %1111 = vmatpush1.msra.mxu0 0.0
    %1112 = vmatprep.subr.mxu0 0.0
    %1113 = vmatpush1.msra.mxu0 0.0
    %1114 = vmatprep.subr.mxu0 0.0
    %1115 = vmatpush1.msra.mxu0 0.0
    %1116 = vmatprep.subr.mxu0 0.0
    %1117 = vmatpush1.msra.mxu0 0.0
    %1118 = vmatprep.subr.mxu0 0.0
    %1119 = vmatpush1.msra.mxu0 0.0
    %1120 = vmatprep.subr.mxu0 0.0
    %1121 = vmatpush1.msra.mxu0 0.0
    %1122 = vmatprep.subr.mxu0 0.0
    %1123 = vmatpush1.msra.mxu0 0.0
    %1124 = vmatprep.subr.mxu0 0.0
    %1125 = vmatpush1.msra.mxu0 0.0
    %1126 = vmatprep.subr.mxu0 0.0
    %1127 = vmatpush1.msra.mxu0 0.0
    %1128 = vmatprep.subr.mxu0 0.0
    %1129 = vmatpush1.msra.mxu0 0.0
    %1130 = vmatprep.subr.mxu0 0.0
    %1131 = vmatpush1.msra.mxu0 0.0
    %1132 = vmatprep.subr.mxu0 0.0
    %1133 = vmatpush1.msra.mxu0 0.0
    %1134 = vmatprep.subr.mxu0 0.0
    %1135 = vmatpush1.msra.mxu0 0.0
    %1136 = vmatprep.subr.mxu0 0.0
    %1137 = vmatpush1.msra.mxu0 0.0
    %1138 = vmatprep.subr.mxu0 0.0
    %1139 = vmatpush1.msra.mxu0 0.0
    %1140 = vmatprep.subr.mxu0 0.0
    %1141 = vmatpush1.msra.mxu0 0.0
    %1142 = vmatprep.mubr.f32.mxu0 0.0
    %1143 = vmatmul.mubr.f32.gmra.mrb[0].mxu0 %v1014
    %v1144 = vpop.f32.mrb[0].mxu0
    %v1145 = vadd.f32 0.0, %v1144
    %v1146 = vpop.f32.mrb[0].mxu0
    %1147 = vmatprep.mubr.f32.mxu0 0.0
    %1148 = vmatmul.mubr.f32.gmra.mrb[0].mxu0 %v1015
    %v1149 = vpop.f32.mrb[0].mxu0
    %v1150 = vadd.f32 0.0, %v1149
    %v1151 = vpop.f32.mrb[0].mxu0
    %1152 = vmatprep.mubr.f32.mxu0 0.0
    %1153 = vmatmul.mubr.f32.gmra.mrb[0].mxu0 %v1016
    %v1154 = vpop.f32.mrb[0].mxu0
    %v1155 = vadd.f32 0.0, %v1154
    %v1156 = vpop.f32.mrb[0].mxu0
    %1157 = vmatprep.mubr.f32.mxu0 0.0
    %1158 = vmatmul.mubr.f32.gmra.mrb[0].mxu0 %v1017
    %v1159 = vpop.f32.mrb[0].mxu0
    %v1160 = vadd.f32 0.0, %v1159
    %v1161 = vpop.f32.mrb[0].mxu0
    %1162 = vdwg.mxu0
    %v1163 = vadd.f32 %v994, %v1145
    %v1164 = vadd.f32 %v995, %v1150
    %v1165 = vadd.f32 %v996, %v1155
    %v1166 = vadd.f32 %v997, %v1160
    %1167 = vst.msk [vmem:[#allocation2] sm:$0xff] %vm969, %v1163
    %1168 = vst.msk [vmem:[#allocation2 + $0x8] sm:$0xff] %vm969, %v1164
    %1169 = vst.msk [vmem:[#allocation2 + $0x10] sm:$0xff] %vm969, %v1165
    %1170 = vst.msk [vmem:[#allocation2 + $0x18] sm:$0xff] %vm969, %v1166
    // Predicated region
    $region22: #{tpu_custom_call.1} parent=1 // pred_check
      %p1171 = pneg %p986
    $region23: #{tpu_custom_call.1} parent=1 // pred_check_branch
      %1173 = sbr.rel (%p1171) target = $region25
    $region24: #{tpu_custom_call.1} parent=1 // pred_region
      %v1174 = vld [vmem:[#allocation2] sm:$0xff]
      %v1175 = vld [vmem:[#allocation2 + $0x8] sm:$0xff]
      %v1176 = vld [vmem:[#allocation2 + $0x10] sm:$0xff]
      %v1177 = vld [vmem:[#allocation2 + $0x18] sm:$0xff]
      %1178 = vst.msk [vmem:[#allocation6] sm:$0xff] %vm969, %v1174
      %1179 = vst.msk [vmem:[#allocation6 + $0x8] sm:$0xff] %vm969, %v1175
      %1180 = vst.msk [vmem:[#allocation6 + $0x10] sm:$0xff] %vm969, %v1176
      %1181 = vst.msk [vmem:[#allocation6 + $0x18] sm:$0xff] %vm969, %v1177
    $region25: #{tpu_custom_call.1} parent=1 // pred_fallthru
      _
    %s1182 = sadd.s32 0, 0
    %s1183 = smul.u32 16, %s1182
    %p1184 = scmp.lt.s32.totalorder %s1183, 15
    %s1185 = scalar_select %p1184, %s1183, 15
    %s1186 = smul.addr %s1185, 8
    %s1187 = scalar_lea.vmem %s3, %s1186
    // Predicated region
    $region26: #{tpu_custom_call.1} parent=1 // pred_check
      _
    $region27: #{tpu_custom_call.1} parent=1 // pred_check_branch
      %1189 = sbr.rel (0) target = $region29
    $region28: #{tpu_custom_call.1} parent=1 // pred_region
      %s1190 = sadd.s32 0, 0
      %s1191 = smul.u32 16, %s1190
    $region29: #{tpu_custom_call.1} parent=1 // pred_fallthru
      _
    // Predicated region
    $region30: #{tpu_custom_call.1} parent=1 // pred_check
      _
    $region31: #{tpu_custom_call.1} parent=1 // pred_check_branch
      %1193 = sbr.rel (0) target = $region33
    $region32: #{tpu_custom_call.1} parent=1 // pred_region
      %s1195 = ssub.s32 512, 512
      %1196 = vsyncadd [#allocation5], %s1195
      %s1197 = sshll.u32 [#allocation6], 4
      %s1198 = int_to_ptr.vmem [resolvable:$true] %s1197
      %1203 = dma.vmem_to_hbm [thread:$0]  %s1198, 512, %s4, [#allocation5], 128, 128, 8
    $region33: #{tpu_custom_call.1} parent=1 // pred_fallthru
      _
    // Predicated region
    $region34: #{tpu_custom_call.1} parent=1 // pred_check
      _
    $region35: #{tpu_custom_call.1} parent=1 // pred_check_branch
      %1205 = sbr.rel (0) target = $region37
    $region36: #{tpu_custom_call.1} parent=1 // pred_region
      %s1206 = sadd.s32 0, 0
      %s1207 = smul.u32 16, %s1206
      %p1208 = scmp.lt.s32.totalorder %s1207, 15
      %s1209 = scalar_select %p1208, %s1207, 15
      %s1210 = smul.addr %s1209, 8
      %s1211 = scalar_lea.vmem %s3, %s1210
    $region37: #{tpu_custom_call.1} parent=1 // pred_fallthru
      _
    // Predicated region
    $region38: #{tpu_custom_call.1} parent=1 // pred_check
      _
    $region39: #{tpu_custom_call.1} parent=1 // pred_check_branch
      %1213 = sbr.rel (0) target = $region41
    $region40: #{tpu_custom_call.1} parent=1 // pred_region
      %1214 = dma.done [#allocation5], 512
    $region41: #{tpu_custom_call.1} parent=1 // pred_fallthru
      _
    %1215 = vsyncpa [#allocation4], 1
    %1216 = vsyncpa [#allocation5], 1

</llo_original>
